<compile_context>
chip_gen: v6e
topology: v6e:2x2x1
jax: 0.10.0
libtpu: 0.0.40
codegen_flags: <defaults>
</compile_context>

<pallas_src>
import functools

import jax
import jax.numpy as jnp
from jax import lax
from jax.experimental import pallas as pl
from jax.experimental.pallas import tpu as pltpu

_LN_EPS = 1e-5      # torch.nn.LayerNorm default
_ROW_ALIGN = 16     # sublane alignment safe for both f32 and bf16 tiles


def _round_up(n, m):
    return ((n + m - 1) // m) * m


def _patch_embed_kernel(x_ref, g1_ref, b1_ref, w_ref, b_ref, g2_ref, b2_ref,
                        o_ref, *, patch_dim, emb_dim):
    """Fused LayerNorm -> Linear -> LayerNorm on one (row_tile, pd_pad) tile.

    x_ref : (row_tile, pd_pad)  input patches, zero on padded lanes
    g1/b1 : (1, pd_pad) f32     LN1 gamma/beta, zero on padded lanes
    w_ref : (pd_pad, ed_pad)    linear weight (matmul dtype), zero padded
    b_ref : (1, ed_pad) f32     linear bias, zero on padded lanes
    g2/b2 : (1, ed_pad) f32     LN2 gamma/beta, zero on padded lanes
    o_ref : (row_tile, ed_pad)
    """
    x = x_ref[...].astype(jnp.float32)
    pd_pad = x.shape[-1]
    ed_pad = o_ref.shape[-1]
    n_pad1 = pd_pad - patch_dim
    n_pad2 = ed_pad - emb_dim

    # ---- LayerNorm over the true patch_dim (biased variance, eps=1e-5). ----
    # Padded lanes of x are zero, so full-lane sums equal true-lane sums and
    # each padded lane contributes exactly mu^2 to sum(d*d): the variance only
    # needs a per-row scalar correction (no per-element iota/where mask).
    mu = jnp.sum(x, axis=-1, keepdims=True) * (1.0 / patch_dim)
    d = x - mu
    ssq = jnp.sum(d * d, axis=-1, keepdims=True)
    if n_pad1:
        ssq = jnp.maximum(ssq - float(n_pad1) * (mu * mu), 0.0)
    var = ssq * (1.0 / patch_dim)
    # gamma/beta are zero on padded lanes -> xn padded lanes are exactly zero.
    xn = d * lax.rsqrt(var + _LN_EPS) * g1_ref[...] + b1_ref[...]

    # ---- Linear(patch_dim -> emb_dim) on the MXU, f32 accumulation. ----
    y = jnp.dot(xn.astype(w_ref.dtype), w_ref[...],
                preferred_element_type=jnp.float32) + b_ref[...]

    # ---- LayerNorm over the true emb_dim (padded y lanes are zero because
    # padded weight columns and bias lanes are zero). ----
    mu2 = jnp.sum(y, axis=-1, keepdims=True) * (1.0 / emb_dim)
    d2 = y - mu2
    ssq2 = jnp.sum(d2 * d2, axis=-1, keepdims=True)
    if n_pad2:
        ssq2 = jnp.maximum(ssq2 - float(n_pad2) * (mu2 * mu2), 0.0)
    var2 = ssq2 * (1.0 / emb_dim)
    o_ref[...] = (d2 * lax.rsqrt(var2 + _LN_EPS) * g2_ref[...]
                  + b2_ref[...]).astype(o_ref.dtype)


def patch_embedding(img, params, *, patch_size,
                    x_dtype=jnp.bfloat16, matmul_dtype=jnp.bfloat16,
                    out_dtype=jnp.bfloat16, target_row_tile=None):
    """img: (B, C, H, W) (NCHW, matching the PyTorch module)."""
    B, C, H, W = img.shape
    P = patch_size
    h, w = H // P, W // P
    num_patches = h * w
    patch_dim = C * P * P

    ln1_g, ln1_b, lin_w, lin_b, ln2_g, ln2_b = params
    emb_dim = lin_w.shape[1]

    # ---- Generation-aware VMEM budget and row-tile target. ----
    try:
        phys_vmem = int(pltpu.get_tpu_info().vmem_capacity_bytes)
    except Exception:
        phys_vmem = 64 << 20              # v7x-safe fallback
    vmem_cap = int(phys_vmem * 0.78)      # ~50 MiB on v7x, ~100 MiB on v5e/v6e
    if target_row_tile is None:
        target_row_tile = 512 if phys_vmem <= (64 << 20) else 1024

    # ---- einops rearrange as host-side glue, done in the narrow dtype so the
    # materialized slab costs half the bytes of the f32 version. ----
    # TODO(synk): fuse the '(h p1)(w p2) -> (h w)(p1 p2 c)' gather into the
    # kernel via per-(b, h) DMAs to remove this materialized pass entirely.
    x = img.astype(x_dtype).reshape(B, C, h, P, w, P)
    x = jnp.transpose(x, (0, 2, 4, 3, 5, 1)).reshape(B * num_patches, patch_dim)

    # ---- Lane-dense padding (multiples of 128) + row tiling. ----
    pd_pad = _round_up(patch_dim, 128)
    ed_pad = _round_up(emb_dim, 128)
    rows = B * num_patches

    x_b = jnp.dtype(x_dtype).itemsize
    o_b = jnp.dtype(out_dtype).itemsize
    w_b = jnp.dtype(matmul_dtype).itemsize

    def vmem_est(rt):
        return (2 * rt * pd_pad * x_b                       # dbl-buffered x tile
                + 2 * rt * ed_pad * o_b                     # dbl-buffered out tile
                + 2 * (pd_pad * ed_pad * w_b                # weight + params
                       + (2 * pd_pad + 3 * ed_pad) * 4)     # (worst case 2 bufs)
                + rt * (pd_pad + 2 * ed_pad) * 4)           # f32 temporaries

    # Largest tile that covers the rows and fits the per-chip VMEM cap.
    row_tile = min(_round_up(target_row_tile, _ROW_ALIGN),
                   _round_up(rows, _ROW_ALIGN))
    while row_tile > _ROW_ALIGN and int(vmem_est(row_tile) * 1.25) > vmem_cap:
        row_tile = max(_ROW_ALIGN, _round_up(row_tile // 2, _ROW_ALIGN))
    # Guarantee >=2 grid steps when possible so both v7x TensorCores get work.
    while (_round_up(rows, row_tile) // row_tile) < 2 and row_tile > _ROW_ALIGN:
        smaller = _round_up(row_tile // 2, _ROW_ALIGN)
        if smaller >= row_tile:
            break
        row_tile = smaller

    rows_pad = _round_up(rows, row_tile)
    grid = (rows_pad // row_tile,)

    if rows_pad != rows or pd_pad != patch_dim:
        x = jnp.pad(x, ((0, rows_pad - rows), (0, pd_pad - patch_dim)))

    def pad_vec(v, n):
        v = v.reshape(1, -1).astype(jnp.float32)
        if v.shape[1] != n:
            v = jnp.pad(v, ((0, 0), (0, n - v.shape[1])))
        return v

    g1 = pad_vec(ln1_g, pd_pad)
    b1 = pad_vec(ln1_b, pd_pad)
    wmat = lin_w
    if wmat.shape != (pd_pad, ed_pad):
        wmat = jnp.pad(wmat, ((0, pd_pad - patch_dim), (0, ed_pad - emb_dim)))
    wmat = wmat.astype(matmul_dtype)          # narrow operand, f32 accumulate
    bb = pad_vec(lin_b, ed_pad)
    g2 = pad_vec(ln2_g, ed_pad)
    b2 = pad_vec(ln2_b, ed_pad)

    est = vmem_est(row_tile)
    vmem_limit = int(min(vmem_cap, max(32 << 20, int(est * 1.25) + (2 << 20))))

    cost = pl.CostEstimate(
        flops=int(2 * rows_pad * pd_pad * ed_pad
                  + 10 * rows_pad * (pd_pad + ed_pad)),
        transcendentals=int(2 * rows_pad),
        bytes_accessed=int(rows_pad * pd_pad * x_b + rows_pad * ed_pad * o_b
                           + pd_pad * ed_pad * w_b
                           + (2 * pd_pad + 3 * ed_pad) * 4),
    )

    kern = functools.partial(_patch_embed_kernel,
                             patch_dim=patch_dim, emb_dim=emb_dim)

    def build_call(single_buffer_consts):
        if single_buffer_consts:
            # Constant-index operands only need one resident VMEM buffer.
            const = lambda shape: pl.BlockSpec(shape, lambda i: (0, 0),
                                               pipeline_mode=pl.Buffered(1))
        else:
            const = lambda shape: pl.BlockSpec(shape, lambda i: (0, 0))
        return pl.pallas_call(
            kern,
            out_shape=jax.ShapeDtypeStruct((rows_pad, ed_pad), out_dtype),
            grid_spec=pltpu.PrefetchScalarGridSpec(
                num_scalar_prefetch=0,
                grid=grid,
                in_specs=[
                    pl.BlockSpec((row_tile, pd_pad), lambda i: (i, 0)),  # x
                    const((1, pd_pad)),         # LN1 gamma
                    const((1, pd_pad)),         # LN1 beta
                    const((pd_pad, ed_pad)),    # linear weight (in, out)
                    const((1, ed_pad)),         # linear bias
                    const((1, ed_pad)),         # LN2 gamma
                    const((1, ed_pad)),         # LN2 beta
                ],
                out_specs=pl.BlockSpec((row_tile, ed_pad), lambda i: (i, 0)),
            ),
            compiler_params=pltpu.CompilerParams(
                dimension_semantics=("parallel",),   # shard grid over v7x TCs
                vmem_limit_bytes=vmem_limit),
            cost_estimate=cost,
        )

    args = (x, g1, b1, wmat, bb, g2, b2)
    try:
        out = build_call(True)(*args)
    except Exception:
        # Fallback if this Pallas version rejects Buffered(1): default
        # double-buffered constants (numerically identical, slightly more VMEM).
        out = build_call(False)(*args)

    out = out[:rows, :emb_dim]
    return out.reshape(B, num_patches, emb_dim)


def init_params(key, patch_dim, emb_dim):
    """Deterministic synthetic parameters (shapes match the PyTorch module)."""
    k_w, k_b = jax.random.split(key)
    bound = 1.0 / (patch_dim ** 0.5)
    ln1_g = jnp.ones((1, patch_dim), jnp.float32)
    ln1_b = jnp.zeros((1, patch_dim), jnp.float32)
    lin_w = jax.random.uniform(k_w, (patch_dim, emb_dim), jnp.float32,
                               minval=-bound, maxval=bound)
    lin_b = jax.random.uniform(k_b, (1, emb_dim), jnp.float32,
                               minval=-bound, maxval=bound)
    ln2_g = jnp.ones((1, emb_dim), jnp.float32)
    ln2_b = jnp.zeros((1, emb_dim), jnp.float32)
    return ln1_g, ln1_b, lin_w, lin_b, ln2_g, ln2_b


def _reference(img, params, patch_size):
    """Pure-JAX f32 reference mirroring the PyTorch forward."""
    B, C, H, W = img.shape
    P = patch_size
    h, w = H // P, W // P
    x = img.reshape(B, C, h, P, w, P)
    x = jnp.transpose(x, (0, 2, 4, 3, 5, 1)).reshape(B, h * w, C * P * P)
    ln1_g, ln1_b, lin_w, lin_b, ln2_g, ln2_b = params

    def ln(v, g, b):
        mu = jnp.mean(v, -1, keepdims=True)
        var = jnp.mean(jnp.square(v - mu), -1, keepdims=True)
        return (v - mu) * lax.rsqrt(var + _LN_EPS) * g + b

    y = ln(x, ln1_g[0], ln1_b[0]) @ lin_w + lin_b[0]
    return ln(y, ln2_g[0], ln2_b[0])


if __name__ == "__main__":
    # Small config: img_size=16, patch_size=4, channels=4, emb_dim=32
    B, C, IMG, PATCH, EMB = 2, 4, 16, 4, 32
    patch_dim = C * PATCH * PATCH  # 64

    key = jax.random.PRNGKey(0)
    k_img, k_par = jax.random.split(key)
    img = jax.random.normal(k_img, (B, C, IMG, IMG), jnp.float32)
    params = init_params(k_par, patch_dim, EMB)

    ref = _reference(img, params, PATCH)
    n_patches = (IMG // PATCH) ** 2

    # 1) Exact-math path (f32 slab, f32 MXU operands, f32 output): tight check
    #    of the kernel structure (padding, variance correction, fusion).
    out_f32 = jax.block_until_ready(
        patch_embedding(img, params, patch_size=PATCH,
                        x_dtype=jnp.float32, matmul_dtype=jnp.float32,
                        out_dtype=jnp.float32))
    assert out_f32.shape == (B, n_patches, EMB), out_f32.shape
    assert jnp.allclose(out_f32, ref, atol=1e-4, rtol=1e-4), \
        float(jnp.max(jnp.abs(out_f32 - ref)))

    # 2) Default fast path (bf16 slab / MXU operands / output, f32 LN math and
    #    f32 accumulation): loose check against the f32 reference.
    out = jax.block_until_ready(
        patch_embedding(img, params, patch_size=PATCH))
    assert out.shape == (B, n_patches, EMB), out.shape
    out_f = out.astype(jnp.float32)
    assert jnp.allclose(out_f, ref, atol=6e-2, rtol=6e-2), \
        float(jnp.max(jnp.abs(out_f - ref)))

    print("KERNEL_OK")
</pallas_src>

<mosaic_0001>
module attributes {stable_mosaic.version = 11 : i64} {
  func.func @_patch_embed_kernel(%arg0: i32, %arg1: memref<16x128xf32, #tpu.memory_space<vmem>>, %arg2: memref<1x128xf32, #tpu.memory_space<vmem>>, %arg3: memref<1x128xf32, #tpu.memory_space<vmem>>, %arg4: memref<128x128xf32, #tpu.memory_space<vmem>>, %arg5: memref<1x128xf32, #tpu.memory_space<vmem>>, %arg6: memref<1x128xf32, #tpu.memory_space<vmem>>, %arg7: memref<1x128xf32, #tpu.memory_space<vmem>>, %arg8: memref<16x128xf32, #tpu.memory_space<vmem>>) attributes {dimension_semantics = [#tpu.dimension_semantics<parallel>], iteration_bounds = array<i64: 2>, scalar_prefetch = 0 : i64, scratch_operands = 0 : i64, tpu.core_type = #tpu.core_type<tc>, window_params = [{transform_indices = @transform_0, window_bounds = array<i64: 16, 128>}, {pipeline_mode = #tpu.pipeline_mode<synchronous>, transform_indices = @transform_1, window_bounds = array<i64: 1, 128>}, {pipeline_mode = #tpu.pipeline_mode<synchronous>, transform_indices = @transform_2, window_bounds = array<i64: 1, 128>}, {pipeline_mode = #tpu.pipeline_mode<synchronous>, transform_indices = @transform_3, window_bounds = array<i64: 128, 128>}, {pipeline_mode = #tpu.pipeline_mode<synchronous>, transform_indices = @transform_4, window_bounds = array<i64: 1, 128>}, {pipeline_mode = #tpu.pipeline_mode<synchronous>, transform_indices = @transform_5, window_bounds = array<i64: 1, 128>}, {pipeline_mode = #tpu.pipeline_mode<synchronous>, transform_indices = @transform_6, window_bounds = array<i64: 1, 128>}, {transform_indices = @transform_7, window_bounds = array<i64: 16, 128>}]} {
    %c0 = arith.constant 0 : index
    %c0_0 = arith.constant 0 : index
    %0 = vector.load %arg1[%c0, %c0_0] : memref<16x128xf32, #tpu.memory_space<vmem>>, vector<16x128xf32>
    %cst = arith.constant dense<0.000000e+00> : vector<16xf32>
    %1 = vector.multi_reduction <add>, %0, %cst [1] : vector<16x128xf32> to vector<16xf32>
    %2 = vector.shape_cast %1 : vector<16xf32> to vector<16x1xf32>
    %cst_1 = arith.constant 1.562500e-02 : f32
    %3 = vector.broadcast %cst_1 : f32 to vector<16x1xf32>
    %4 = arith.mulf %2, %3 : vector<16x1xf32>
    %5 = vector.broadcast %4 : vector<16x1xf32> to vector<16x128xf32>
    %6 = arith.subf %0, %5 : vector<16x128xf32>
    %7 = arith.mulf %6, %6 : vector<16x128xf32>
    %cst_2 = arith.constant dense<0.000000e+00> : vector<16xf32>
    %8 = vector.multi_reduction <add>, %7, %cst_2 [1] : vector<16x128xf32> to vector<16xf32>
    %9 = vector.shape_cast %8 : vector<16xf32> to vector<16x1xf32>
    %10 = arith.mulf %4, %4 : vector<16x1xf32>
    %cst_3 = arith.constant 6.400000e+01 : f32
    %11 = vector.broadcast %cst_3 : f32 to vector<16x1xf32>
    %12 = arith.mulf %11, %10 : vector<16x1xf32>
    %13 = arith.subf %9, %12 : vector<16x1xf32>
    %cst_4 = arith.constant 0.000000e+00 : f32
    %14 = vector.broadcast %cst_4 : f32 to vector<16x1xf32>
    %15 = arith.maximumf %13, %14 : vector<16x1xf32>
    %cst_5 = arith.constant 1.562500e-02 : f32
    %16 = vector.broadcast %cst_5 : f32 to vector<16x1xf32>
    %17 = arith.mulf %15, %16 : vector<16x1xf32>
    %cst_6 = arith.constant 9.99999974E-6 : f32
    %18 = vector.broadcast %cst_6 : f32 to vector<16x1xf32>
    %19 = arith.addf %17, %18 : vector<16x1xf32>
    %20 = math.rsqrt %19 : vector<16x1xf32>
    %21 = vector.broadcast %20 : vector<16x1xf32> to vector<16x128xf32>
    %22 = arith.mulf %6, %21 : vector<16x128xf32>
    %c0_7 = arith.constant 0 : index
    %c0_8 = arith.constant 0 : index
    %23 = vector.load %arg2[%c0_7, %c0_8] : memref<1x128xf32, #tpu.memory_space<vmem>>, vector<1x128xf32>
    %24 = vector.broadcast %23 : vector<1x128xf32> to vector<16x128xf32>
    %25 = arith.mulf %22, %24 : vector<16x128xf32>
    %c0_9 = arith.constant 0 : index
    %c0_10 = arith.constant 0 : index
    %26 = vector.load %arg3[%c0_9, %c0_10] : memref<1x128xf32, #tpu.memory_space<vmem>>, vector<1x128xf32>
    %27 = vector.broadcast %26 : vector<1x128xf32> to vector<16x128xf32>
    %28 = arith.addf %25, %27 : vector<16x128xf32>
    %c0_11 = arith.constant 0 : index
    %c0_12 = arith.constant 0 : index
    %29 = vector.load %arg4[%c0_11, %c0_12] : memref<128x128xf32, #tpu.memory_space<vmem>>, vector<128x128xf32>
    %cst_13 = arith.constant dense<0.000000e+00> : vector<16x128xf32>
    %30 = tpu.matmul %28, %29, %cst_13 {dimension_numbers = #tpu.dot_dimension_numbers<[1], [0], [0], [1], [0, 0, 1, 1], [], []>} : vector<16x128xf32>, vector<128x128xf32>, vector<16x128xf32> -> vector<16x128xf32>
    %c0_14 = arith.constant 0 : index
    %c0_15 = arith.constant 0 : index
    %31 = vector.load %arg5[%c0_14, %c0_15] : memref<1x128xf32, #tpu.memory_space<vmem>>, vector<1x128xf32>
    %32 = vector.broadcast %31 : vector<1x128xf32> to vector<16x128xf32>
    %33 = arith.addf %30, %32 : vector<16x128xf32>
    %cst_16 = arith.constant dense<0.000000e+00> : vector<16xf32>
    %34 = vector.multi_reduction <add>, %33, %cst_16 [1] : vector<16x128xf32> to vector<16xf32>
    %35 = vector.shape_cast %34 : vector<16xf32> to vector<16x1xf32>
    %cst_17 = arith.constant 3.125000e-02 : f32
    %36 = vector.broadcast %cst_17 : f32 to vector<16x1xf32>
    %37 = arith.mulf %35, %36 : vector<16x1xf32>
    %38 = vector.broadcast %37 : vector<16x1xf32> to vector<16x128xf32>
    %39 = arith.subf %33, %38 : vector<16x128xf32>
    %40 = arith.mulf %39, %39 : vector<16x128xf32>
    %cst_18 = arith.constant dense<0.000000e+00> : vector<16xf32>
    %41 = vector.multi_reduction <add>, %40, %cst_18 [1] : vector<16x128xf32> to vector<16xf32>
    %42 = vector.shape_cast %41 : vector<16xf32> to vector<16x1xf32>
    %43 = arith.mulf %37, %37 : vector<16x1xf32>
    %cst_19 = arith.constant 9.600000e+01 : f32
    %44 = vector.broadcast %cst_19 : f32 to vector<16x1xf32>
    %45 = arith.mulf %44, %43 : vector<16x1xf32>
    %46 = arith.subf %42, %45 : vector<16x1xf32>
    %cst_20 = arith.constant 0.000000e+00 : f32
    %47 = vector.broadcast %cst_20 : f32 to vector<16x1xf32>
    %48 = arith.maximumf %46, %47 : vector<16x1xf32>
    %cst_21 = arith.constant 3.125000e-02 : f32
    %49 = vector.broadcast %cst_21 : f32 to vector<16x1xf32>
    %50 = arith.mulf %48, %49 : vector<16x1xf32>
    %cst_22 = arith.constant 9.99999974E-6 : f32
    %51 = vector.broadcast %cst_22 : f32 to vector<16x1xf32>
    %52 = arith.addf %50, %51 : vector<16x1xf32>
    %53 = math.rsqrt %52 : vector<16x1xf32>
    %54 = vector.broadcast %53 : vector<16x1xf32> to vector<16x128xf32>
    %55 = arith.mulf %39, %54 : vector<16x128xf32>
    %c0_23 = arith.constant 0 : index
    %c0_24 = arith.constant 0 : index
    %56 = vector.load %arg6[%c0_23, %c0_24] : memref<1x128xf32, #tpu.memory_space<vmem>>, vector<1x128xf32>
    %57 = vector.broadcast %56 : vector<1x128xf32> to vector<16x128xf32>
    %58 = arith.mulf %55, %57 : vector<16x128xf32>
    %c0_25 = arith.constant 0 : index
    %c0_26 = arith.constant 0 : index
    %59 = vector.load %arg7[%c0_25, %c0_26] : memref<1x128xf32, #tpu.memory_space<vmem>>, vector<1x128xf32>
    %60 = vector.broadcast %59 : vector<1x128xf32> to vector<16x128xf32>
    %61 = arith.addf %58, %60 : vector<16x128xf32>
    %c0_27 = arith.constant 0 : index
    %c0_28 = arith.constant 0 : index
    %62 = vector.load %arg8[%c0_27, %c0_28] : memref<16x128xf32, #tpu.memory_space<vmem>>, vector<16x128xf32>
    tpu.vector_store %arg8[%c0_27, %c0_28], %61 {strides = array<i32>} : memref<16x128xf32, #tpu.memory_space<vmem>>, vector<16x128xf32>,
    return
  }
  func.func @transform_0(%arg0: i32) -> (i32, i32) {
    %c0_i32 = arith.constant 0 : i32
    %c0_i32_0 = arith.constant 0 : i32
    return %arg0, %c0_i32 : i32, i32
  }
  func.func @transform_1(%arg0: i32) -> (i32, i32) {
    %c0_i32 = arith.constant 0 : i32
    %c0_i32_0 = arith.constant 0 : i32
    %c0_i32_1 = arith.constant 0 : i32
    return %c0_i32, %c0_i32_0 : i32, i32
  }
  func.func @transform_2(%arg0: i32) -> (i32, i32) {
    %c0_i32 = arith.constant 0 : i32
    %c0_i32_0 = arith.constant 0 : i32
    %c0_i32_1 = arith.constant 0 : i32
    return %c0_i32, %c0_i32_0 : i32, i32
  }
  func.func @transform_3(%arg0: i32) -> (i32, i32) {
    %c0_i32 = arith.constant 0 : i32
    %c0_i32_0 = arith.constant 0 : i32
    %c0_i32_1 = arith.constant 0 : i32
    return %c0_i32, %c0_i32_0 : i32, i32
  }
  func.func @transform_4(%arg0: i32) -> (i32, i32) {
    %c0_i32 = arith.constant 0 : i32
    %c0_i32_0 = arith.constant 0 : i32
    %c0_i32_1 = arith.constant 0 : i32
    return %c0_i32, %c0_i32_0 : i32, i32
  }
  func.func @transform_5(%arg0: i32) -> (i32, i32) {
    %c0_i32 = arith.constant 0 : i32
    %c0_i32_0 = arith.constant 0 : i32
    %c0_i32_1 = arith.constant 0 : i32
    return %c0_i32, %c0_i32_0 : i32, i32
  }
  func.func @transform_6(%arg0: i32) -> (i32, i32) {
    %c0_i32 = arith.constant 0 : i32
    %c0_i32_0 = arith.constant 0 : i32
    %c0_i32_1 = arith.constant 0 : i32
    return %c0_i32, %c0_i32_0 : i32, i32
  }
  func.func @transform_7(%arg0: i32) -> (i32, i32) {
    %c0_i32 = arith.constant 0 : i32
    %c0_i32_0 = arith.constant 0 : i32
    return %arg0, %c0_i32 : i32, i32
  }
}

module attributes {stable_mosaic.version = 11 : i64} {
  func.func @_patch_embed_kernel(%arg0: i32, %arg1: memref<16x128xf32, #tpu.memory_space<vmem>>, %arg2: memref<1x128xf32, #tpu.memory_space<vmem>>, %arg3: memref<1x128xf32, #tpu.memory_space<vmem>>, %arg4: memref<128x128xf32, #tpu.memory_space<vmem>>, %arg5: memref<1x128xf32, #tpu.memory_space<vmem>>, %arg6: memref<1x128xf32, #tpu.memory_space<vmem>>, %arg7: memref<1x128xf32, #tpu.memory_space<vmem>>, %arg8: memref<16x128xf32, #tpu.memory_space<vmem>>) attributes {dimension_semantics = [#tpu.dimension_semantics<parallel>], iteration_bounds = array<i64: 2>, scalar_prefetch = 0 : i64, scratch_operands = 0 : i64, tpu.core_type = #tpu.core_type<tc>, window_params = [{transform_indices = @transform_0, window_bounds = array<i64: 16, 128>}, {pipeline_mode = #tpu.pipeline_mode<synchronous>, transform_indices = @transform_1, window_bounds = array<i64: 1, 128>}, {pipeline_mode = #tpu.pipeline_mode<synchronous>, transform_indices = @transform_2, window_bounds = array<i64: 1, 128>}, {pipeline_mode = #tpu.pipeline_mode<synchronous>, transform_indices = @transform_3, window_bounds = array<i64: 128, 128>}, {pipeline_mode = #tpu.pipeline_mode<synchronous>, transform_indices = @transform_4, window_bounds = array<i64: 1, 128>}, {pipeline_mode = #tpu.pipeline_mode<synchronous>, transform_indices = @transform_5, window_bounds = array<i64: 1, 128>}, {pipeline_mode = #tpu.pipeline_mode<synchronous>, transform_indices = @transform_6, window_bounds = array<i64: 1, 128>}, {transform_indices = @transform_7, window_bounds = array<i64: 16, 128>}]} {
    %c0 = arith.constant 0 : index
    %c0_0 = arith.constant 0 : index
    %0 = vector.load %arg1[%c0, %c0_0] : memref<16x128xf32, #tpu.memory_space<vmem>>, vector<16x128xf32>
    %cst = arith.constant dense<0.000000e+00> : vector<16xf32>
    %1 = vector.multi_reduction <add>, %0, %cst [1] : vector<16x128xf32> to vector<16xf32>
    %2 = vector.shape_cast %1 : vector<16xf32> to vector<16x1xf32>
    %cst_1 = arith.constant 1.562500e-02 : f32
    %3 = vector.broadcast %cst_1 : f32 to vector<16x1xf32>
    %4 = arith.mulf %2, %3 : vector<16x1xf32>
    %5 = vector.broadcast %4 : vector<16x1xf32> to vector<16x128xf32>
    %6 = arith.subf %0, %5 : vector<16x128xf32>
    %7 = arith.mulf %6, %6 : vector<16x128xf32>
    %cst_2 = arith.constant dense<0.000000e+00> : vector<16xf32>
    %8 = vector.multi_reduction <add>, %7, %cst_2 [1] : vector<16x128xf32> to vector<16xf32>
    %9 = vector.shape_cast %8 : vector<16xf32> to vector<16x1xf32>
    %10 = arith.mulf %4, %4 : vector<16x1xf32>
    %cst_3 = arith.constant 6.400000e+01 : f32
    %11 = vector.broadcast %cst_3 : f32 to vector<16x1xf32>
    %12 = arith.mulf %11, %10 : vector<16x1xf32>
    %13 = arith.subf %9, %12 : vector<16x1xf32>
    %cst_4 = arith.constant 0.000000e+00 : f32
    %14 = vector.broadcast %cst_4 : f32 to vector<16x1xf32>
    %15 = arith.maximumf %13, %14 : vector<16x1xf32>
    %cst_5 = arith.constant 1.562500e-02 : f32
    %16 = vector.broadcast %cst_5 : f32 to vector<16x1xf32>
    %17 = arith.mulf %15, %16 : vector<16x1xf32>
    %cst_6 = arith.constant 9.99999974E-6 : f32
    %18 = vector.broadcast %cst_6 : f32 to vector<16x1xf32>
    %19 = arith.addf %17, %18 : vector<16x1xf32>
    %20 = math.rsqrt %19 : vector<16x1xf32>
    %21 = vector.broadcast %20 : vector<16x1xf32> to vector<16x128xf32>
    %22 = arith.mulf %6, %21 : vector<16x128xf32>
    %c0_7 = arith.constant 0 : index
    %c0_8 = arith.constant 0 : index
    %23 = vector.load %arg2[%c0_7, %c0_8] : memref<1x128xf32, #tpu.memory_space<vmem>>, vector<1x128xf32>
    %24 = vector.broadcast %23 : vector<1x128xf32> to vector<16x128xf32>
    %25 = arith.mulf %22, %24 : vector<16x128xf32>
    %c0_9 = arith.constant 0 : index
    %c0_10 = arith.constant 0 : index
    %26 = vector.load %arg3[%c0_9, %c0_10] : memref<1x128xf32, #tpu.memory_space<vmem>>, vector<1x128xf32>
    %27 = vector.broadcast %26 : vector<1x128xf32> to vector<16x128xf32>
    %28 = arith.addf %25, %27 : vector<16x128xf32>
    %c0_11 = arith.constant 0 : index
    %c0_12 = arith.constant 0 : index
    %29 = vector.load %arg4[%c0_11, %c0_12] : memref<128x128xf32, #tpu.memory_space<vmem>>, vector<128x128xf32>
    %cst_13 = arith.constant dense<0.000000e+00> : vector<16x128xf32>
    %30 = tpu.matmul %28, %29, %cst_13 {dimension_numbers = #tpu.dot_dimension_numbers<[1], [0], [0], [1], [0, 0, 1, 1], [], []>} : vector<16x128xf32>, vector<128x128xf32>, vector<16x128xf32> -> vector<16x128xf32>
    %c0_14 = arith.constant 0 : index
    %c0_15 = arith.constant 0 : index
    %31 = vector.load %arg5[%c0_14, %c0_15] : memref<1x128xf32, #tpu.memory_space<vmem>>, vector<1x128xf32>
    %32 = vector.broadcast %31 : vector<1x128xf32> to vector<16x128xf32>
    %33 = arith.addf %30, %32 : vector<16x128xf32>
    %cst_16 = arith.constant dense<0.000000e+00> : vector<16xf32>
    %34 = vector.multi_reduction <add>, %33, %cst_16 [1] : vector<16x128xf32> to vector<16xf32>
    %35 = vector.shape_cast %34 : vector<16xf32> to vector<16x1xf32>
    %cst_17 = arith.constant 3.125000e-02 : f32
    %36 = vector.broadcast %cst_17 : f32 to vector<16x1xf32>
    %37 = arith.mulf %35, %36 : vector<16x1xf32>
    %38 = vector.broadcast %37 : vector<16x1xf32> to vector<16x128xf32>
    %39 = arith.subf %33, %38 : vector<16x128xf32>
    %40 = arith.mulf %39, %39 : vector<16x128xf32>
    %cst_18 = arith.constant dense<0.000000e+00> : vector<16xf32>
    %41 = vector.multi_reduction <add>, %40, %cst_18 [1] : vector<16x128xf32> to vector<16xf32>
    %42 = vector.shape_cast %41 : vector<16xf32> to vector<16x1xf32>
    %43 = arith.mulf %37, %37 : vector<16x1xf32>
    %cst_19 = arith.constant 9.600000e+01 : f32
    %44 = vector.broadcast %cst_19 : f32 to vector<16x1xf32>
    %45 = arith.mulf %44, %43 : vector<16x1xf32>
    %46 = arith.subf %42, %45 : vector<16x1xf32>
    %cst_20 = arith.constant 0.000000e+00 : f32
    %47 = vector.broadcast %cst_20 : f32 to vector<16x1xf32>
    %48 = arith.maximumf %46, %47 : vector<16x1xf32>
    %cst_21 = arith.constant 3.125000e-02 : f32
    %49 = vector.broadcast %cst_21 : f32 to vector<16x1xf32>
    %50 = arith.mulf %48, %49 : vector<16x1xf32>
    %cst_22 = arith.constant 9.99999974E-6 : f32
    %51 = vector.broadcast %cst_22 : f32 to vector<16x1xf32>
    %52 = arith.addf %50, %51 : vector<16x1xf32>
    %53 = math.rsqrt %52 : vector<16x1xf32>
    %54 = vector.broadcast %53 : vector<16x1xf32> to vector<16x128xf32>
    %55 = arith.mulf %39, %54 : vector<16x128xf32>
    %c0_23 = arith.constant 0 : index
    %c0_24 = arith.constant 0 : index
    %56 = vector.load %arg6[%c0_23, %c0_24] : memref<1x128xf32, #tpu.memory_space<vmem>>, vector<1x128xf32>
    %57 = vector.broadcast %56 : vector<1x128xf32> to vector<16x128xf32>
    %58 = arith.mulf %55, %57 : vector<16x128xf32>
    %c0_25 = arith.constant 0 : index
    %c0_26 = arith.constant 0 : index
    %59 = vector.load %arg7[%c0_25, %c0_26] : memref<1x128xf32, #tpu.memory_space<vmem>>, vector<1x128xf32>
    %60 = vector.broadcast %59 : vector<1x128xf32> to vector<16x128xf32>
    %61 = arith.addf %58, %60 : vector<16x128xf32>
    %c0_27 = arith.constant 0 : index
    %c0_28 = arith.constant 0 : index
    %62 = vector.load %arg8[%c0_27, %c0_28] : memref<16x128xf32, #tpu.memory_space<vmem>>, vector<16x128xf32>
    tpu.vector_store %arg8[%c0_27, %c0_28], %61 {strides = array<i32>} : memref<16x128xf32, #tpu.memory_space<vmem>>, vector<16x128xf32>,
    return
  }
  func.func @transform_0(%arg0: i32) -> (i32, i32) {
    %c0_i32 = arith.constant 0 : i32
    %c0_i32_0 = arith.constant 0 : i32
    return %arg0, %c0_i32 : i32, i32
  }
  func.func @transform_1(%arg0: i32) -> (i32, i32) {
    %c0_i32 = arith.constant 0 : i32
    %c0_i32_0 = arith.constant 0 : i32
    %c0_i32_1 = arith.constant 0 : i32
    return %c0_i32, %c0_i32_0 : i32, i32
  }
  func.func @transform_2(%arg0: i32) -> (i32, i32) {
    %c0_i32 = arith.constant 0 : i32
    %c0_i32_0 = arith.constant 0 : i32
    %c0_i32_1 = arith.constant 0 : i32
    return %c0_i32, %c0_i32_0 : i32, i32
  }
  func.func @transform_3(%arg0: i32) -> (i32, i32) {
    %c0_i32 = arith.constant 0 : i32
    %c0_i32_0 = arith.constant 0 : i32
    %c0_i32_1 = arith.constant 0 : i32
    return %c0_i32, %c0_i32_0 : i32, i32
  }
  func.func @transform_4(%arg0: i32) -> (i32, i32) {
    %c0_i32 = arith.constant 0 : i32
    %c0_i32_0 = arith.constant 0 : i32
    %c0_i32_1 = arith.constant 0 : i32
    return %c0_i32, %c0_i32_0 : i32, i32
  }
  func.func @transform_5(%arg0: i32) -> (i32, i32) {
    %c0_i32 = arith.constant 0 : i32
    %c0_i32_0 = arith.constant 0 : i32
    %c0_i32_1 = arith.constant 0 : i32
    return %c0_i32, %c0_i32_0 : i32, i32
  }
  func.func @transform_6(%arg0: i32) -> (i32, i32) {
    %c0_i32 = arith.constant 0 : i32
    %c0_i32_0 = arith.constant 0 : i32
    %c0_i32_1 = arith.constant 0 : i32
    return %c0_i32, %c0_i32_0 : i32, i32
  }
  func.func @transform_7(%arg0: i32) -> (i32, i32) {
    %c0_i32 = arith.constant 0 : i32
    %c0_i32_0 = arith.constant 0 : i32
    return %arg0, %c0_i32 : i32, i32
  }
}

</mosaic_0001>

<llo_original>
// kernel: tpu_custom_call.1
$region0: #{tpu_custom_call.1}
  #allocation0 [shape = 'u32[]', space=smem, size = 0x4, offset = 0x4, fixed_abs, tag = 'smem constant byte address 0x4 - core index']
  #allocation1 [shape = 'u32[144,128]{1,0:T(1,128)}', space=vmem, size = 0x12000, scoped, tag = 'internal scratch']
  %s0 = inlined_call_operand.hbm [shape: f32[32,128], index: 0, kind: input, shape index: {}]
  %s1 = inlined_call_operand.vmem [shape: f32[1,128], index: 1, kind: input, shape index: {}]
  %s2 = inlined_call_operand.vmem [shape: f32[1,128], index: 2, kind: input, shape index: {}]
  %s3 = inlined_call_operand.hbm [shape: f32[128,128], index: 3, kind: input, shape index: {}]
  %s4 = inlined_call_operand.vmem [shape: f32[1,128], index: 4, kind: input, shape index: {}]
  %s5 = inlined_call_operand.vmem [shape: f32[1,128], index: 5, kind: input, shape index: {}]
  %s6 = inlined_call_operand.vmem [shape: f32[1,128], index: 6, kind: input, shape index: {}]
  %s7 = inlined_call_operand.hbm [shape: f32[32,128], index: 7, kind: output, shape index: {}]
  %s8 = sld [smem:[#allocation0]]
  $region69: #{tpu_custom_call.1} parent=0
    _
  %s10 = ssub.s32 1, %s8
  %s11 = scalar_select 0, %s10, %s8
  $region1: #{tpu_custom_call.1} parent=0
    #allocation2 [shape = 'u8[16384]{0}', space=vmem, size = 0x4000, scoped, tag = 'input window, operand 0']
    #allocation3 [shape = 's32[2]{0}', space=sflag, size = 0x8, scoped, tag = 'scoped memory for tpu_custom_call.1']
    #allocation4 [shape = 's32[2]{0}', space=sflag, size = 0x8, scoped, tag = 'scoped memory for tpu_custom_call.1']
    #allocation5 [shape = 'u8[65536]{0}', space=vmem, size = 0x10000, scoped, tag = 'input window, operand 3, single buffered']
    #allocation6 [shape = 's32[1]{0}', space=sflag, size = 0x4, scoped, tag = 'scoped memory for tpu_custom_call.1']
    #allocation7 [shape = 'u8[16384]{0}', space=vmem, size = 0x4000, scoped, tag = 'output window, operand 0']
    %12 = vsyncpa [#allocation3], 0
    %s13 = scalar_lea.sflag [#allocation3], 1
    %14 = vsyncpa %s13, 0
    %15 = vsyncpa [#allocation6], 0
    %16 = vsyncpa [#allocation4], 0
    %s17 = scalar_lea.sflag [#allocation4], 1
    %18 = vsyncpa %s17, 0
    loop: start=0, step=1, limit=4
    $region2: #{tpu_custom_call.1} parent=1 // loop_pre_header
      _
    $region3: #{tpu_custom_call.1} parent=1 // loop_header
      %s20 = sphi 0, %s24
      %p21 = scmp.ge.s32.totalorder %s20, 4
      %s30 = sphi 0, %s32
      %s33 = sphi 0, %s30
      %s34 = sphi 0, %s33
      %s50 = sphi 0, %s34
      %s54 = sphi 0, %s54
      %s56 = sphi 0, %s54
      %s57 = sphi 0, %s56
      %s71 = sphi 0, %s57
      %s75 = sphi 0, %s75
      %s77 = sphi 0, %s75
      %s78 = sphi 0, %s77
      %s92 = sphi 0, %s78
      %s96 = sphi 0, %s96
      %s98 = sphi 0, %s96
      %s99 = sphi 0, %s98
      %s113 = sphi 0, %s99
      %s117 = sphi 0, %s117
      %s119 = sphi 0, %s117
      %s120 = sphi 0, %s119
      %s134 = sphi 0, %s120
      %s138 = sphi 0, %s138
      %s140 = sphi 0, %s138
      %s141 = sphi 0, %s140
      %s155 = sphi 0, %s141
      %s159 = sphi 0, %s159
      %s161 = sphi 0, %s159
      %s162 = sphi 0, %s161
      %s176 = sphi 0, %s162
      %s182 = sphi 0, %s184
      %s185 = sphi 0, %s182
      %s186 = sphi 0, %s185
      %s202 = sphi 0, %s186
    $region4: #{tpu_custom_call.1} parent=1 // loop_header_branch
      %23 = sbr.rel (%p21) target = $region8
    $region5: #{tpu_custom_call.1} parent=1 // loop_body
      %s25 = ssub.s32 %s20, 1
      %s26 = ssub.s32 %s20, 2
      %s27 = sadd.s32 %s20, 1
      %s28 = ssub.s32 %s20, %s27
      %p29 = scmp.eq.s32.totalorder %s28, 0
      %s31 = sadd.s32 %s30, 1
      %s32 = scalar_select %p29, %s30, %s31
      %p35 = pneg %p29
      %p36 = scmp.eq.s32.totalorder %s20, 1
      %p37 = por %p35, %p36
      %p38 = scmp.ne.s32.totalorder %s30, %s33
      %p39 = scmp.eq.s32.totalorder %s20, 0
      %p40 = por %p38, %p39
      %p41 = scmp.ne.s32.totalorder %s30, %s33
      %p42 = scmp.eq.s32.totalorder %s25, 1
      %p43 = por %p41, %p42
      %p44 = scmp.ne.s32.totalorder %s33, %s34
      %p45 = scmp.eq.s32.totalorder %s25, 0
      %p46 = por %p44, %p45
      %p47 = scmp.ne.s32.totalorder %s33, %s34
      %p48 = scmp.eq.s32.totalorder %s26, 1
      %p49 = por %p47, %p48
      %p51 = scmp.ne.s32.totalorder %s34, %s50
      %p52 = scmp.eq.s32.totalorder %s26, 0
      %p53 = por %p51, %p52
      %s55 = sadd.s32 %s54, 1
      %p58 = scmp.eq.s32.totalorder %s20, 1
      %p59 = scmp.ne.s32.totalorder %s54, %s56
      %p60 = scmp.eq.s32.totalorder %s20, 0
      %p61 = por %p59, %p60
      %p62 = scmp.ne.s32.totalorder %s54, %s56
      %p63 = scmp.eq.s32.totalorder %s25, 1
      %p64 = por %p62, %p63
      %p65 = scmp.ne.s32.totalorder %s56, %s57
      %p66 = scmp.eq.s32.totalorder %s25, 0
      %p67 = por %p65, %p66
      %p68 = scmp.ne.s32.totalorder %s56, %s57
      %p69 = scmp.eq.s32.totalorder %s26, 1
      %p70 = por %p68, %p69
      %p72 = scmp.ne.s32.totalorder %s57, %s71
      %p73 = scmp.eq.s32.totalorder %s26, 0
      %p74 = por %p72, %p73
      %s76 = sadd.s32 %s75, 1
      %p79 = scmp.eq.s32.totalorder %s20, 1
      %p80 = scmp.ne.s32.totalorder %s75, %s77
      %p81 = scmp.eq.s32.totalorder %s20, 0
      %p82 = por %p80, %p81
      %p83 = scmp.ne.s32.totalorder %s75, %s77
      %p84 = scmp.eq.s32.totalorder %s25, 1
      %p85 = por %p83, %p84
      %p86 = scmp.ne.s32.totalorder %s77, %s78
      %p87 = scmp.eq.s32.totalorder %s25, 0
      %p88 = por %p86, %p87
      %p89 = scmp.ne.s32.totalorder %s77, %s78
      %p90 = scmp.eq.s32.totalorder %s26, 1
      %p91 = por %p89, %p90
      %p93 = scmp.ne.s32.totalorder %s78, %s92
      %p94 = scmp.eq.s32.totalorder %s26, 0
      %p95 = por %p93, %p94
      %s97 = sadd.s32 %s96, 1
      %p100 = scmp.eq.s32.totalorder %s20, 1
      %p101 = scmp.ne.s32.totalorder %s96, %s98
      %p102 = scmp.eq.s32.totalorder %s20, 0
      %p103 = por %p101, %p102
      %p104 = scmp.ne.s32.totalorder %s96, %s98
      %p105 = scmp.eq.s32.totalorder %s25, 1
      %p106 = por %p104, %p105
      %p107 = scmp.ne.s32.totalorder %s98, %s99
      %p108 = scmp.eq.s32.totalorder %s25, 0
      %p109 = por %p107, %p108
      %p110 = scmp.ne.s32.totalorder %s98, %s99
      %p111 = scmp.eq.s32.totalorder %s26, 1
      %p112 = por %p110, %p111
      %p114 = scmp.ne.s32.totalorder %s99, %s113
      %p115 = scmp.eq.s32.totalorder %s26, 0
      %p116 = por %p114, %p115
      %s118 = sadd.s32 %s117, 1
      %p121 = scmp.eq.s32.totalorder %s20, 1
      %p122 = scmp.ne.s32.totalorder %s117, %s119
      %p123 = scmp.eq.s32.totalorder %s20, 0
      %p124 = por %p122, %p123
      %p125 = scmp.ne.s32.totalorder %s117, %s119
      %p126 = scmp.eq.s32.totalorder %s25, 1
      %p127 = por %p125, %p126
      %p128 = scmp.ne.s32.totalorder %s119, %s120
      %p129 = scmp.eq.s32.totalorder %s25, 0
      %p130 = por %p128, %p129
      %p131 = scmp.ne.s32.totalorder %s119, %s120
      %p132 = scmp.eq.s32.totalorder %s26, 1
      %p133 = por %p131, %p132
      %p135 = scmp.ne.s32.totalorder %s120, %s134
      %p136 = scmp.eq.s32.totalorder %s26, 0
      %p137 = por %p135, %p136
      %s139 = sadd.s32 %s138, 1
      %p142 = scmp.eq.s32.totalorder %s20, 1
      %p143 = scmp.ne.s32.totalorder %s138, %s140
      %p144 = scmp.eq.s32.totalorder %s20, 0
      %p145 = por %p143, %p144
      %p146 = scmp.ne.s32.totalorder %s138, %s140
      %p147 = scmp.eq.s32.totalorder %s25, 1
      %p148 = por %p146, %p147
      %p149 = scmp.ne.s32.totalorder %s140, %s141
      %p150 = scmp.eq.s32.totalorder %s25, 0
      %p151 = por %p149, %p150
      %p152 = scmp.ne.s32.totalorder %s140, %s141
      %p153 = scmp.eq.s32.totalorder %s26, 1
      %p154 = por %p152, %p153
      %p156 = scmp.ne.s32.totalorder %s141, %s155
      %p157 = scmp.eq.s32.totalorder %s26, 0
      %p158 = por %p156, %p157
      %s160 = sadd.s32 %s159, 1
      %p163 = scmp.eq.s32.totalorder %s20, 1
      %p164 = scmp.ne.s32.totalorder %s159, %s161
      %p165 = scmp.eq.s32.totalorder %s20, 0
      %p166 = por %p164, %p165
      %p167 = scmp.ne.s32.totalorder %s159, %s161
      %p168 = scmp.eq.s32.totalorder %s25, 1
      %p169 = por %p167, %p168
      %p170 = scmp.ne.s32.totalorder %s161, %s162
      %p171 = scmp.eq.s32.totalorder %s25, 0
      %p172 = por %p170, %p171
      %p173 = scmp.ne.s32.totalorder %s161, %s162
      %p174 = scmp.eq.s32.totalorder %s26, 1
      %p175 = por %p173, %p174
      %p177 = scmp.ne.s32.totalorder %s162, %s176
      %p178 = scmp.eq.s32.totalorder %s26, 0
      %p179 = por %p177, %p178
      %s180 = ssub.s32 %s20, %s27
      %p181 = scmp.eq.s32.totalorder %s180, 0
      %s183 = sadd.s32 %s182, 1
      %s184 = scalar_select %p181, %s182, %s183
      %p187 = pneg %p181
      %p188 = scmp.eq.s32.totalorder %s20, 1
      %p189 = por %p187, %p188
      %p190 = scmp.ne.s32.totalorder %s182, %s185
      %p191 = scmp.eq.s32.totalorder %s20, 0
      %p192 = por %p190, %p191
      %p193 = scmp.ne.s32.totalorder %s182, %s185
      %p194 = scmp.eq.s32.totalorder %s25, 1
      %p195 = por %p193, %p194
      %p196 = scmp.ne.s32.totalorder %s185, %s186
      %p197 = scmp.eq.s32.totalorder %s25, 0
      %p198 = por %p196, %p197
      %p199 = scmp.ne.s32.totalorder %s185, %s186
      %p200 = scmp.eq.s32.totalorder %s26, 1
      %p201 = por %p199, %p200
      %p203 = scmp.ne.s32.totalorder %s186, %s202
      %p204 = scmp.eq.s32.totalorder %s26, 0
      %p205 = por %p203, %p204
      %p206 = scmp.le.s32.totalorder 1, %s20
      %p207 = scmp.lt.s32.totalorder %s20, 3
      %p208 = pnand %p206, %p207
      %p209 = pneg %p208
      // Predicated region
      $region9: #{tpu_custom_call.1} parent=5 // pred_check
        _
      $region10: #{tpu_custom_call.1} parent=5 // pred_check_branch
        %211 = sbr.rel (%p208) target = $region12
      $region11: #{tpu_custom_call.1} parent=5 // pred_region
        %s212 = ssub.s32 %s20, 1
        // Predicated region
        $region13: #{tpu_custom_call.1} parent=11 // pred_check
          %p213 = pneg %p67
        $region14: #{tpu_custom_call.1} parent=11 // pred_check_branch
          %215 = sbr.rel (%p213) target = $region16
        $region15: #{tpu_custom_call.1} parent=11 // pred_region
          _
        $region16: #{tpu_custom_call.1} parent=11 // pred_fallthru
          _
        // Predicated region
        $region17: #{tpu_custom_call.1} parent=11 // pred_check
          %p216 = pneg %p88
        $region18: #{tpu_custom_call.1} parent=11 // pred_check_branch
          %218 = sbr.rel (%p216) target = $region20
        $region19: #{tpu_custom_call.1} parent=11 // pred_region
          _
        $region20: #{tpu_custom_call.1} parent=11 // pred_fallthru
          _
        // Predicated region
        $region21: #{tpu_custom_call.1} parent=11 // pred_check
          %p219 = pneg %p109
        $region22: #{tpu_custom_call.1} parent=11 // pred_check_branch
          %221 = sbr.rel (%p219) target = $region24
        $region23: #{tpu_custom_call.1} parent=11 // pred_region
          %s223 = ssub.s32 2048, 2048
          %224 = vsyncadd [#allocation6], %s223
          %s225 = sshll.u32 [#allocation5], 4
          %s226 = int_to_ptr.vmem [resolvable:$true] %s225
          %231 = dma.hbm_to_vmem [thread:$0]  %s3, 2048, %s226, [#allocation6], 128, 128, 8
        $region24: #{tpu_custom_call.1} parent=11 // pred_fallthru
          _
        // Predicated region
        $region25: #{tpu_custom_call.1} parent=11 // pred_check
          %p232 = pneg %p130
        $region26: #{tpu_custom_call.1} parent=11 // pred_check_branch
          %234 = sbr.rel (%p232) target = $region28
        $region27: #{tpu_custom_call.1} parent=11 // pred_region
          _
        $region28: #{tpu_custom_call.1} parent=11 // pred_fallthru
          _
        // Predicated region
        $region29: #{tpu_custom_call.1} parent=11 // pred_check
          %p235 = pneg %p151
        $region30: #{tpu_custom_call.1} parent=11 // pred_check_branch
          %237 = sbr.rel (%p235) target = $region32
        $region31: #{tpu_custom_call.1} parent=11 // pred_region
          _
        $region32: #{tpu_custom_call.1} parent=11 // pred_fallthru
          _
        // Predicated region
        $region33: #{tpu_custom_call.1} parent=11 // pred_check
          %p238 = pneg %p172
        $region34: #{tpu_custom_call.1} parent=11 // pred_check_branch
          %240 = sbr.rel (%p238) target = $region36
        $region35: #{tpu_custom_call.1} parent=11 // pred_region
          _
        $region36: #{tpu_custom_call.1} parent=11 // pred_fallthru
          _
      $region12: #{tpu_custom_call.1} parent=5 // pred_fallthru
        _
      %p241 = scmp.lt.s32.totalorder %s20, 2
      // Predicated region
      $region37: #{tpu_custom_call.1} parent=5 // pred_check
        %p242 = pneg %p241
      $region38: #{tpu_custom_call.1} parent=5 // pred_check_branch
        %244 = sbr.rel (%p242) target = $region40
      $region39: #{tpu_custom_call.1} parent=5 // pred_region
        // Predicated region
        $region41: #{tpu_custom_call.1} parent=39 // pred_check
          %p245 = pneg %p40
        $region42: #{tpu_custom_call.1} parent=39 // pred_check_branch
          %247 = sbr.rel (%p245) target = $region44
        $region43: #{tpu_custom_call.1} parent=39 // pred_region
          %s248 = sand.u32 %s30, 1
          %s249 = scalar_lea.sflag [#allocation3], %s248
          %s250 = sand.u32 %s30, 1
          %s251 = smul.addr %s250, 16
          %s252 = scalar_lea.vmem [#allocation2], %s251
          %s253 = smul.u32 2, %s20
          %s255 = ssub.s32 256, 256
          %256 = vsyncadd %s249, %s255
          %s257 = smul.addr %s253, 128
          %s258 = scalar_lea.hbm %s0, %s257
          %s259 = sshll.u32 %s252, 4
          %s260 = int_to_ptr.vmem [resolvable:$true] %s259
          %265 = dma.hbm_to_vmem [thread:$0]  %s258, 256, %s260, %s249, 128, 128, 8
        $region44: #{tpu_custom_call.1} parent=39 // pred_fallthru
          _
      $region40: #{tpu_custom_call.1} parent=5 // pred_fallthru
        _
      %p266 = scmp.le.s32.totalorder 1, %s20
      %p267 = scmp.lt.s32.totalorder %s20, 3
      %p268 = pnand %p266, %p267
      %p269 = pneg %p268
      // Predicated region
      $region45: #{tpu_custom_call.1} parent=5 // pred_check
        _
      $region46: #{tpu_custom_call.1} parent=5 // pred_check_branch
        %271 = sbr.rel (%p268) target = $region48
      $region47: #{tpu_custom_call.1} parent=5 // pred_region
        %s272 = ssub.s32 %s20, 1
        %s273 = sand.u32 %s33, 1
        %s274 = scalar_lea.sflag [#allocation3], %s273
        %s275 = sand.u32 %s33, 1
        %s276 = smul.addr %s275, 16
        %s277 = scalar_lea.vmem [#allocation2], %s276
        // Predicated region
        $region49: #{tpu_custom_call.1} parent=47 // pred_check
          %p278 = pneg %p46
        $region50: #{tpu_custom_call.1} parent=47 // pred_check_branch
          %280 = sbr.rel (%p278) target = $region52
        $region51: #{tpu_custom_call.1} parent=47 // pred_region
          %281 = dma.done %s274, 256
        $region52: #{tpu_custom_call.1} parent=47 // pred_fallthru
          _
        // Predicated region
        $region53: #{tpu_custom_call.1} parent=47 // pred_check
          %p282 = pneg %p109
        $region54: #{tpu_custom_call.1} parent=47 // pred_check_branch
          %284 = sbr.rel (%p282) target = $region56
        $region55: #{tpu_custom_call.1} parent=47 // pred_region
          %285 = dma.done [#allocation6], 2048
        $region56: #{tpu_custom_call.1} parent=47 // pred_fallthru
          _
        %s286 = sand.u32 %s33, 1
        %s287 = scalar_lea.sflag [#allocation3], %s286
        %s288 = sand.u32 %s33, 1
        %s289 = smul.addr %s288, 16
        %s290 = scalar_lea.vmem [#allocation2], %s289
        %p291 = pneg %p46
        %p292 = pneg %p43
        %p293 = pneg %p67
        %p294 = pneg %p64
        %p295 = pneg %p88
        %p296 = pneg %p85
        %p297 = pneg %p109
        %p298 = pneg %p106
        %p299 = pneg %p130
        %p300 = pneg %p127
        %p301 = pneg %p151
        %p302 = pneg %p148
        %p303 = pneg %p172
        %p304 = pneg %p169
        %p305 = pneg %p198
        %p306 = pneg %p195
        %s307 = sand.u32 %s185, 1
        %s308 = scalar_lea.sflag [#allocation4], %s307
        %s309 = sand.u32 %s185, 1
        %s310 = smul.addr %s309, 16
        %s311 = scalar_lea.vmem [#allocation7], %s310
        %s312 = smul.u32 2, %s25
        %s313 = smul.u32 2, %s25
        %v314 = vld [vmem:[%s277] sm:$0xff]
        %v315 = vld [vmem:[%s277 + $0x8] sm:$0xff]
        %316 = vadd.xlane.f32.xlu0 %v314
        %v317 = vpop.xlane.xlu0 %316
        %318 = vadd.xlane.f32.xlu0 %v315
        %v319 = vpop.xlane.xlu0 %318
        %v320 = vmul.f32 %v317, 0.015625
        %v321 = vmul.f32 %v319, 0.015625
        %v322 = vsub.f32 %v314, %v320
        %v323 = vsub.f32 %v315, %v321
        %v324 = vmul.f32 %v322, %v322
        %v325 = vmul.f32 %v323, %v323
        %326 = vadd.xlane.f32.xlu0 %v324
        %v327 = vpop.xlane.xlu0 %326
        %328 = vadd.xlane.f32.xlu0 %v325
        %v329 = vpop.xlane.xlu0 %328
        %v330 = vmul.f32 %v320, %v320
        %v331 = vmul.f32 %v321, %v321
        %v332 = vmul.f32 %v330, 64.0
        %v333 = vmul.f32 %v331, 64.0
        %v334 = vsub.f32 %v327, %v332
        %v335 = vsub.f32 %v329, %v333
        %v336 = vmax.f32 %v334, 0.0
        %v337 = vmax.f32 %v335, 0.0
        %v338 = vmul.f32 %v336, 0.015625
        %v339 = vmul.f32 %v337, 0.015625
        %v340 = vadd.f32 %v338, 1e-05
        %v341 = vadd.f32 %v339, 1e-05
        %v342 = vrsqrt.pop %v340
        %v343 = vrsqrt.pop %v341
        %v344 = vmul.f32 %v322, %v342
        %v345 = vmul.f32 %v323, %v343
        %v346 = vld [vmem:[%s1] sm:$0x1]
        %v348 = vlaneseq
        %v349 = vshrl.u32 %v348, 7
        %v350 = vsub.s32 0, %v349
        %v351 = vrot.slane %v346, %v350
        %v353 = vmul.f32 %v344, %v351
        %v354 = vmul.f32 %v345, %v351
        %v355 = vld [vmem:[%s2] sm:$0x1]
        %v357 = vlaneseq
        %v358 = vshrl.u32 %v357, 7
        %v359 = vsub.s32 0, %v358
        %v360 = vrot.slane %v355, %v359
        %v362 = vadd.f32 %v353, %v360
        %v363 = vadd.f32 %v354, %v360
        %v364 = vld [vmem:[#allocation5] sm:$0xff]
        %v365 = vld [vmem:[#allocation5 + $0x8] sm:$0xff]
        %v366 = vld [vmem:[#allocation5 + $0x10] sm:$0xff]
        %v367 = vld [vmem:[#allocation5 + $0x18] sm:$0xff]
        %v368 = vld [vmem:[#allocation5 + $0x20] sm:$0xff]
        %v369 = vld [vmem:[#allocation5 + $0x28] sm:$0xff]
        %v370 = vld [vmem:[#allocation5 + $0x30] sm:$0xff]
        %v371 = vld [vmem:[#allocation5 + $0x38] sm:$0xff]
        %v372 = vld [vmem:[#allocation5 + $0x40] sm:$0xff]
        %v373 = vld [vmem:[#allocation5 + $0x48] sm:$0xff]
        %v374 = vld [vmem:[#allocation5 + $0x50] sm:$0xff]
        %v375 = vld [vmem:[#allocation5 + $0x58] sm:$0xff]
        %v376 = vld [vmem:[#allocation5 + $0x60] sm:$0xff]
        %v377 = vld [vmem:[#allocation5 + $0x68] sm:$0xff]
        %v378 = vld [vmem:[#allocation5 + $0x70] sm:$0xff]
        %v379 = vld [vmem:[#allocation5 + $0x78] sm:$0xff]
        %v380 = vld [vmem:[%s4] sm:$0x1]
        %v382 = vlaneseq
        %v383 = vshrl.u32 %v382, 7
        %v384 = vsub.s32 0, %v383
        %v385 = vrot.slane %v380, %v384
        %387 = vmatprep.subr.mxu0 0.0
        %388 = vmatpush1.msra.mxu0 %v379
        %389 = vmatprep.subr.mxu0 0.0
        %390 = vmatpush1.msra.mxu0 %v378
        %391 = vmatprep.subr.mxu0 0.0
        %392 = vmatpush1.msra.mxu0 %v377
        %393 = vmatprep.subr.mxu0 0.0
        %394 = vmatpush1.msra.mxu0 %v376
        %395 = vmatprep.subr.mxu0 0.0
        %396 = vmatpush1.msra.mxu0 %v375
        %397 = vmatprep.subr.mxu0 0.0
        %398 = vmatpush1.msra.mxu0 %v374
        %399 = vmatprep.subr.mxu0 0.0
        %400 = vmatpush1.msra.mxu0 %v373
        %401 = vmatprep.subr.mxu0 0.0
        %402 = vmatpush1.msra.mxu0 %v372
        %403 = vmatprep.subr.mxu0 0.0
        %404 = vmatpush1.msra.mxu0 %v371
        %405 = vmatprep.subr.mxu0 0.0
        %406 = vmatpush1.msra.mxu0 %v370
        %407 = vmatprep.subr.mxu0 0.0
        %408 = vmatpush1.msra.mxu0 %v369
        %409 = vmatprep.subr.mxu0 0.0
        %410 = vmatpush1.msra.mxu0 %v368
        %411 = vmatprep.subr.mxu0 0.0
        %412 = vmatpush1.msra.mxu0 %v367
        %413 = vmatprep.subr.mxu0 0.0
        %414 = vmatpush1.msra.mxu0 %v366
        %415 = vmatprep.subr.mxu0 0.0
        %416 = vmatpush1.msra.mxu0 %v365
        %417 = vmatprep.subr.mxu0 0.0
        %418 = vmatpush1.msra.mxu0 %v364
        %419 = vmatprep.subr.mxu0 0.0
        %420 = vmatpush2.msra.mxu0 0.0
        %421 = vmatprep.subr.mxu0 0.0
        %422 = vmatpush2.msra.mxu0 0.0
        %423 = vmatprep.subr.mxu0 0.0
        %424 = vmatpush2.msra.mxu0 0.0
        %425 = vmatprep.subr.mxu0 0.0
        %426 = vmatpush2.msra.mxu0 0.0
        %427 = vmatprep.subr.mxu0 0.0
        %428 = vmatpush2.msra.mxu0 0.0
        %429 = vmatprep.subr.mxu0 0.0
        %430 = vmatpush2.msra.mxu0 0.0
        %431 = vmatprep.subr.mxu0 0.0
        %432 = vmatpush2.msra.mxu0 0.0
        %433 = vmatprep.subr.mxu0 0.0
        %434 = vmatpush2.msra.mxu0 0.0
        %435 = vmatprep.subr.mxu0 0.0
        %436 = vmatpush2.msra.mxu0 0.0
        %437 = vmatprep.subr.mxu0 0.0
        %438 = vmatpush2.msra.mxu0 0.0
        %439 = vmatprep.subr.mxu0 0.0
        %440 = vmatpush2.msra.mxu0 0.0
        %441 = vmatprep.subr.mxu0 0.0
        %442 = vmatpush2.msra.mxu0 0.0
        %443 = vmatprep.subr.mxu0 0.0
        %444 = vmatpush2.msra.mxu0 0.0
        %445 = vmatprep.subr.mxu0 0.0
        %446 = vmatpush2.msra.mxu0 0.0
        %447 = vmatprep.subr.mxu0 0.0
        %448 = vmatpush2.msra.mxu0 0.0
        %449 = vmatprep.subr.mxu0 0.0
        %450 = vmatpush2.msra.mxu0 0.0
        %451 = vmatprep.mubr.f32.mxu0 0.0
        %452 = vmatmul.mubr.f32.gmra.mxu0 %v362
        %v453 = vpop.f32.mrf.mxu0
        %v454 = vadd.f32 %v385, %v453
        %v455 = vpop.f32.mrf.mxu0
        %456 = vmatprep.mubr.f32.mxu0 0.0
        %457 = vmatmul.mubr.f32.gmra.mxu0 %v363
        %v458 = vpop.f32.mrf.mxu0
        %v459 = vadd.f32 %v385, %v458
        %v460 = vpop.f32.mrf.mxu0
        %461 = vdwg.mxu0
        %462 = vadd.xlane.f32.xlu0 %v454
        %v463 = vpop.xlane.xlu0 %462
        %464 = vadd.xlane.f32.xlu0 %v459
        %v465 = vpop.xlane.xlu0 %464
        %v466 = vmul.f32 %v463, 0.03125
        %v467 = vmul.f32 %v465, 0.03125
        %v468 = vsub.f32 %v454, %v466
        %v469 = vsub.f32 %v459, %v467
        %v470 = vmul.f32 %v468, %v468
        %v471 = vmul.f32 %v469, %v469
        %472 = vadd.xlane.f32.xlu0 %v470
        %v473 = vpop.xlane.xlu0 %472
        %474 = vadd.xlane.f32.xlu0 %v471
        %v475 = vpop.xlane.xlu0 %474
        %v476 = vmul.f32 %v466, %v466
        %v477 = vmul.f32 %v467, %v467
        %v478 = vmul.f32 %v476, 96.0
        %v479 = vmul.f32 %v477, 96.0
        %v480 = vsub.f32 %v473, %v478
        %v481 = vsub.f32 %v475, %v479
        %v482 = vmax.f32 %v480, 0.0
        %v483 = vmax.f32 %v481, 0.0
        %v484 = vmul.f32 %v482, 0.03125
        %v485 = vmul.f32 %v483, 0.03125
        %v486 = vadd.f32 %v484, 1e-05
        %v487 = vadd.f32 %v485, 1e-05
        %v488 = vrsqrt.pop %v486
        %v489 = vrsqrt.pop %v487
        %v490 = vmul.f32 %v468, %v488
        %v491 = vmul.f32 %v469, %v489
        %v492 = vld [vmem:[%s5] sm:$0x1]
        %v494 = vlaneseq
        %v495 = vshrl.u32 %v494, 7
        %v496 = vsub.s32 0, %v495
        %v497 = vrot.slane %v492, %v496
        %v499 = vmul.f32 %v490, %v497
        %v500 = vmul.f32 %v491, %v497
        %v501 = vld [vmem:[%s6] sm:$0x1]
        %v503 = vlaneseq
        %v504 = vshrl.u32 %v503, 7
        %v505 = vsub.s32 0, %v504
        %v506 = vrot.slane %v501, %v505
        %v508 = vadd.f32 %v499, %v506
        %v509 = vadd.f32 %v500, %v506
        %510 = vst [vmem:[%s311] sm:$0xff] %v508
        %511 = vst [vmem:[%s311 + $0x8] sm:$0xff] %v509
        %s512 = sand.u32 %s185, 1
        %s513 = scalar_lea.sflag [#allocation4], %s512
        %s514 = sand.u32 %s185, 1
        %s515 = smul.addr %s514, 16
        %s516 = scalar_lea.vmem [#allocation7], %s515
        // Predicated region
        $region57: #{tpu_custom_call.1} parent=47 // pred_check
          %p517 = pneg %p195
        $region58: #{tpu_custom_call.1} parent=47 // pred_check_branch
          %519 = sbr.rel (%p517) target = $region60
        $region59: #{tpu_custom_call.1} parent=47 // pred_region
          %s520 = smul.u32 2, %s25
          %s522 = ssub.s32 256, 256
          %523 = vsyncadd %s513, %s522
          %s524 = smul.addr %s520, 128
          %s525 = scalar_lea.hbm %s7, %s524
          %s526 = sshll.u32 %s516, 4
          %s527 = int_to_ptr.vmem [resolvable:$true] %s526
          %532 = dma.vmem_to_hbm [thread:$0]  %s527, 256, %s525, %s513, 128, 128, 8
        $region60: #{tpu_custom_call.1} parent=47 // pred_fallthru
          _
      $region48: #{tpu_custom_call.1} parent=5 // pred_fallthru
        _
      %p533 = scmp.le.s32.totalorder 2, %s20
      // Predicated region
      $region61: #{tpu_custom_call.1} parent=5 // pred_check
        %p534 = pneg %p533
      $region62: #{tpu_custom_call.1} parent=5 // pred_check_branch
        %536 = sbr.rel (%p534) target = $region64
      $region63: #{tpu_custom_call.1} parent=5 // pred_region
        %s537 = ssub.s32 %s20, 2
        // Predicated region
        $region65: #{tpu_custom_call.1} parent=63 // pred_check
          %p538 = pneg %p201
        $region66: #{tpu_custom_call.1} parent=63 // pred_check_branch
          %540 = sbr.rel (%p538) target = $region68
        $region67: #{tpu_custom_call.1} parent=63 // pred_region
          %s541 = sand.u32 %s186, 1
          %s542 = scalar_lea.sflag [#allocation4], %s541
          %s543 = sand.u32 %s186, 1
          %s544 = smul.addr %s543, 16
          %s545 = scalar_lea.vmem [#allocation7], %s544
          %546 = dma.done %s542, 256
        $region68: #{tpu_custom_call.1} parent=63 // pred_fallthru
          _
      $region64: #{tpu_custom_call.1} parent=5 // pred_fallthru
        _
    $region6: #{tpu_custom_call.1} parent=1 // loop_footer
      %s24 = sadd.s32 1, %s20
    $region7: #{tpu_custom_call.1} parent=1 // loop_footer_branch
      %19 = sbr.rel target = $region3
    $region8: #{tpu_custom_call.1} parent=1 // loop_exit
      _
    %547 = vsyncpa [#allocation3], 1
    %s548 = scalar_lea.sflag [#allocation3], 1
    %549 = vsyncpa %s548, 1
    %550 = vsyncpa [#allocation6], 1
    %551 = vsyncpa [#allocation4], 1
    %s552 = scalar_lea.sflag [#allocation4], 1
    %553 = vsyncpa %s552, 1

// kernel: tpu_custom_call.1
$region0: #{tpu_custom_call.1}
  #allocation0 [shape = 'u32[]', space=smem, size = 0x4, offset = 0x4, fixed_abs, tag = 'smem constant byte address 0x4 - core index']
  #allocation1 [shape = 'u32[144,128]{1,0:T(1,128)}', space=vmem, size = 0x12000, scoped, tag = 'internal scratch']
  %s0 = inlined_call_operand.hbm [shape: f32[32,128], index: 0, kind: input, shape index: {}]
  %s1 = inlined_call_operand.vmem [shape: f32[1,128], index: 1, kind: input, shape index: {}]
  %s2 = inlined_call_operand.vmem [shape: f32[1,128], index: 2, kind: input, shape index: {}]
  %s3 = inlined_call_operand.hbm [shape: f32[128,128], index: 3, kind: input, shape index: {}]
  %s4 = inlined_call_operand.vmem [shape: f32[1,128], index: 4, kind: input, shape index: {}]
  %s5 = inlined_call_operand.vmem [shape: f32[1,128], index: 5, kind: input, shape index: {}]
  %s6 = inlined_call_operand.vmem [shape: f32[1,128], index: 6, kind: input, shape index: {}]
  %s7 = inlined_call_operand.hbm [shape: f32[32,128], index: 7, kind: output, shape index: {}]
  %s8 = sld [smem:[#allocation0]]
  $region69: #{tpu_custom_call.1} parent=0
    _
  %s10 = ssub.s32 1, %s8
  %s11 = scalar_select 0, %s10, %s8
  $region1: #{tpu_custom_call.1} parent=0
    #allocation2 [shape = 'u8[16384]{0}', space=vmem, size = 0x4000, scoped, tag = 'input window, operand 0']
    #allocation3 [shape = 's32[2]{0}', space=sflag, size = 0x8, scoped, tag = 'scoped memory for tpu_custom_call.1']
    #allocation4 [shape = 's32[2]{0}', space=sflag, size = 0x8, scoped, tag = 'scoped memory for tpu_custom_call.1']
    #allocation5 [shape = 'u8[65536]{0}', space=vmem, size = 0x10000, scoped, tag = 'input window, operand 3, single buffered']
    #allocation6 [shape = 's32[1]{0}', space=sflag, size = 0x4, scoped, tag = 'scoped memory for tpu_custom_call.1']
    #allocation7 [shape = 'u8[16384]{0}', space=vmem, size = 0x4000, scoped, tag = 'output window, operand 0']
    %12 = vsyncpa [#allocation3], 0
    %s13 = scalar_lea.sflag [#allocation3], 1
    %14 = vsyncpa %s13, 0
    %15 = vsyncpa [#allocation6], 0
    %16 = vsyncpa [#allocation4], 0
    %s17 = scalar_lea.sflag [#allocation4], 1
    %18 = vsyncpa %s17, 0
    loop: start=0, step=1, limit=4
    $region2: #{tpu_custom_call.1} parent=1 // loop_pre_header
      _
    $region3: #{tpu_custom_call.1} parent=1 // loop_header
      %s20 = sphi 0, %s24
      %p21 = scmp.ge.s32.totalorder %s20, 4
      %s30 = sphi 0, %s32
      %s33 = sphi 0, %s30
      %s34 = sphi 0, %s33
      %s50 = sphi 0, %s34
      %s54 = sphi 0, %s54
      %s56 = sphi 0, %s54
      %s57 = sphi 0, %s56
      %s71 = sphi 0, %s57
      %s75 = sphi 0, %s75
      %s77 = sphi 0, %s75
      %s78 = sphi 0, %s77
      %s92 = sphi 0, %s78
      %s96 = sphi 0, %s96
      %s98 = sphi 0, %s96
      %s99 = sphi 0, %s98
      %s113 = sphi 0, %s99
      %s117 = sphi 0, %s117
      %s119 = sphi 0, %s117
      %s120 = sphi 0, %s119
      %s134 = sphi 0, %s120
      %s138 = sphi 0, %s138
      %s140 = sphi 0, %s138
      %s141 = sphi 0, %s140
      %s155 = sphi 0, %s141
      %s159 = sphi 0, %s159
      %s161 = sphi 0, %s159
      %s162 = sphi 0, %s161
      %s176 = sphi 0, %s162
      %s182 = sphi 0, %s184
      %s185 = sphi 0, %s182
      %s186 = sphi 0, %s185
      %s202 = sphi 0, %s186
    $region4: #{tpu_custom_call.1} parent=1 // loop_header_branch
      %23 = sbr.rel (%p21) target = $region8
    $region5: #{tpu_custom_call.1} parent=1 // loop_body
      %s25 = ssub.s32 %s20, 1
      %s26 = ssub.s32 %s20, 2
      %s27 = sadd.s32 %s20, 1
      %s28 = ssub.s32 %s20, %s27
      %p29 = scmp.eq.s32.totalorder %s28, 0
      %s31 = sadd.s32 %s30, 1
      %s32 = scalar_select %p29, %s30, %s31
      %p35 = pneg %p29
      %p36 = scmp.eq.s32.totalorder %s20, 1
      %p37 = por %p35, %p36
      %p38 = scmp.ne.s32.totalorder %s30, %s33
      %p39 = scmp.eq.s32.totalorder %s20, 0
      %p40 = por %p38, %p39
      %p41 = scmp.ne.s32.totalorder %s30, %s33
      %p42 = scmp.eq.s32.totalorder %s25, 1
      %p43 = por %p41, %p42
      %p44 = scmp.ne.s32.totalorder %s33, %s34
      %p45 = scmp.eq.s32.totalorder %s25, 0
      %p46 = por %p44, %p45
      %p47 = scmp.ne.s32.totalorder %s33, %s34
      %p48 = scmp.eq.s32.totalorder %s26, 1
      %p49 = por %p47, %p48
      %p51 = scmp.ne.s32.totalorder %s34, %s50
      %p52 = scmp.eq.s32.totalorder %s26, 0
      %p53 = por %p51, %p52
      %s55 = sadd.s32 %s54, 1
      %p58 = scmp.eq.s32.totalorder %s20, 1
      %p59 = scmp.ne.s32.totalorder %s54, %s56
      %p60 = scmp.eq.s32.totalorder %s20, 0
      %p61 = por %p59, %p60
      %p62 = scmp.ne.s32.totalorder %s54, %s56
      %p63 = scmp.eq.s32.totalorder %s25, 1
      %p64 = por %p62, %p63
      %p65 = scmp.ne.s32.totalorder %s56, %s57
      %p66 = scmp.eq.s32.totalorder %s25, 0
      %p67 = por %p65, %p66
      %p68 = scmp.ne.s32.totalorder %s56, %s57
      %p69 = scmp.eq.s32.totalorder %s26, 1
      %p70 = por %p68, %p69
      %p72 = scmp.ne.s32.totalorder %s57, %s71
      %p73 = scmp.eq.s32.totalorder %s26, 0
      %p74 = por %p72, %p73
      %s76 = sadd.s32 %s75, 1
      %p79 = scmp.eq.s32.totalorder %s20, 1
      %p80 = scmp.ne.s32.totalorder %s75, %s77
      %p81 = scmp.eq.s32.totalorder %s20, 0
      %p82 = por %p80, %p81
      %p83 = scmp.ne.s32.totalorder %s75, %s77
      %p84 = scmp.eq.s32.totalorder %s25, 1
      %p85 = por %p83, %p84
      %p86 = scmp.ne.s32.totalorder %s77, %s78
      %p87 = scmp.eq.s32.totalorder %s25, 0
      %p88 = por %p86, %p87
      %p89 = scmp.ne.s32.totalorder %s77, %s78
      %p90 = scmp.eq.s32.totalorder %s26, 1
      %p91 = por %p89, %p90
      %p93 = scmp.ne.s32.totalorder %s78, %s92
      %p94 = scmp.eq.s32.totalorder %s26, 0
      %p95 = por %p93, %p94
      %s97 = sadd.s32 %s96, 1
      %p100 = scmp.eq.s32.totalorder %s20, 1
      %p101 = scmp.ne.s32.totalorder %s96, %s98
      %p102 = scmp.eq.s32.totalorder %s20, 0
      %p103 = por %p101, %p102
      %p104 = scmp.ne.s32.totalorder %s96, %s98
      %p105 = scmp.eq.s32.totalorder %s25, 1
      %p106 = por %p104, %p105
      %p107 = scmp.ne.s32.totalorder %s98, %s99
      %p108 = scmp.eq.s32.totalorder %s25, 0
      %p109 = por %p107, %p108
      %p110 = scmp.ne.s32.totalorder %s98, %s99
      %p111 = scmp.eq.s32.totalorder %s26, 1
      %p112 = por %p110, %p111
      %p114 = scmp.ne.s32.totalorder %s99, %s113
      %p115 = scmp.eq.s32.totalorder %s26, 0
      %p116 = por %p114, %p115
      %s118 = sadd.s32 %s117, 1
      %p121 = scmp.eq.s32.totalorder %s20, 1
      %p122 = scmp.ne.s32.totalorder %s117, %s119
      %p123 = scmp.eq.s32.totalorder %s20, 0
      %p124 = por %p122, %p123
      %p125 = scmp.ne.s32.totalorder %s117, %s119
      %p126 = scmp.eq.s32.totalorder %s25, 1
      %p127 = por %p125, %p126
      %p128 = scmp.ne.s32.totalorder %s119, %s120
      %p129 = scmp.eq.s32.totalorder %s25, 0
      %p130 = por %p128, %p129
      %p131 = scmp.ne.s32.totalorder %s119, %s120
      %p132 = scmp.eq.s32.totalorder %s26, 1
      %p133 = por %p131, %p132
      %p135 = scmp.ne.s32.totalorder %s120, %s134
      %p136 = scmp.eq.s32.totalorder %s26, 0
      %p137 = por %p135, %p136
      %s139 = sadd.s32 %s138, 1
      %p142 = scmp.eq.s32.totalorder %s20, 1
      %p143 = scmp.ne.s32.totalorder %s138, %s140
      %p144 = scmp.eq.s32.totalorder %s20, 0
      %p145 = por %p143, %p144
      %p146 = scmp.ne.s32.totalorder %s138, %s140
      %p147 = scmp.eq.s32.totalorder %s25, 1
      %p148 = por %p146, %p147
      %p149 = scmp.ne.s32.totalorder %s140, %s141
      %p150 = scmp.eq.s32.totalorder %s25, 0
      %p151 = por %p149, %p150
      %p152 = scmp.ne.s32.totalorder %s140, %s141
      %p153 = scmp.eq.s32.totalorder %s26, 1
      %p154 = por %p152, %p153
      %p156 = scmp.ne.s32.totalorder %s141, %s155
      %p157 = scmp.eq.s32.totalorder %s26, 0
      %p158 = por %p156, %p157
      %s160 = sadd.s32 %s159, 1
      %p163 = scmp.eq.s32.totalorder %s20, 1
      %p164 = scmp.ne.s32.totalorder %s159, %s161
      %p165 = scmp.eq.s32.totalorder %s20, 0
      %p166 = por %p164, %p165
      %p167 = scmp.ne.s32.totalorder %s159, %s161
      %p168 = scmp.eq.s32.totalorder %s25, 1
      %p169 = por %p167, %p168
      %p170 = scmp.ne.s32.totalorder %s161, %s162
      %p171 = scmp.eq.s32.totalorder %s25, 0
      %p172 = por %p170, %p171
      %p173 = scmp.ne.s32.totalorder %s161, %s162
      %p174 = scmp.eq.s32.totalorder %s26, 1
      %p175 = por %p173, %p174
      %p177 = scmp.ne.s32.totalorder %s162, %s176
      %p178 = scmp.eq.s32.totalorder %s26, 0
      %p179 = por %p177, %p178
      %s180 = ssub.s32 %s20, %s27
      %p181 = scmp.eq.s32.totalorder %s180, 0
      %s183 = sadd.s32 %s182, 1
      %s184 = scalar_select %p181, %s182, %s183
      %p187 = pneg %p181
      %p188 = scmp.eq.s32.totalorder %s20, 1
      %p189 = por %p187, %p188
      %p190 = scmp.ne.s32.totalorder %s182, %s185
      %p191 = scmp.eq.s32.totalorder %s20, 0
      %p192 = por %p190, %p191
      %p193 = scmp.ne.s32.totalorder %s182, %s185
      %p194 = scmp.eq.s32.totalorder %s25, 1
      %p195 = por %p193, %p194
      %p196 = scmp.ne.s32.totalorder %s185, %s186
      %p197 = scmp.eq.s32.totalorder %s25, 0
      %p198 = por %p196, %p197
      %p199 = scmp.ne.s32.totalorder %s185, %s186
      %p200 = scmp.eq.s32.totalorder %s26, 1
      %p201 = por %p199, %p200
      %p203 = scmp.ne.s32.totalorder %s186, %s202
      %p204 = scmp.eq.s32.totalorder %s26, 0
      %p205 = por %p203, %p204
      %p206 = scmp.le.s32.totalorder 1, %s20
      %p207 = scmp.lt.s32.totalorder %s20, 3
      %p208 = pnand %p206, %p207
      %p209 = pneg %p208
      // Predicated region
      $region9: #{tpu_custom_call.1} parent=5 // pred_check
        _
      $region10: #{tpu_custom_call.1} parent=5 // pred_check_branch
        %211 = sbr.rel (%p208) target = $region12
      $region11: #{tpu_custom_call.1} parent=5 // pred_region
        %s212 = ssub.s32 %s20, 1
        // Predicated region
        $region13: #{tpu_custom_call.1} parent=11 // pred_check
          %p213 = pneg %p67
        $region14: #{tpu_custom_call.1} parent=11 // pred_check_branch
          %215 = sbr.rel (%p213) target = $region16
        $region15: #{tpu_custom_call.1} parent=11 // pred_region
          _
        $region16: #{tpu_custom_call.1} parent=11 // pred_fallthru
          _
        // Predicated region
        $region17: #{tpu_custom_call.1} parent=11 // pred_check
          %p216 = pneg %p88
        $region18: #{tpu_custom_call.1} parent=11 // pred_check_branch
          %218 = sbr.rel (%p216) target = $region20
        $region19: #{tpu_custom_call.1} parent=11 // pred_region
          _
        $region20: #{tpu_custom_call.1} parent=11 // pred_fallthru
          _
        // Predicated region
        $region21: #{tpu_custom_call.1} parent=11 // pred_check
          %p219 = pneg %p109
        $region22: #{tpu_custom_call.1} parent=11 // pred_check_branch
          %221 = sbr.rel (%p219) target = $region24
        $region23: #{tpu_custom_call.1} parent=11 // pred_region
          %s223 = ssub.s32 2048, 2048
          %224 = vsyncadd [#allocation6], %s223
          %s225 = sshll.u32 [#allocation5], 4
          %s226 = int_to_ptr.vmem [resolvable:$true] %s225
          %231 = dma.hbm_to_vmem [thread:$0]  %s3, 2048, %s226, [#allocation6], 128, 128, 8
        $region24: #{tpu_custom_call.1} parent=11 // pred_fallthru
          _
        // Predicated region
        $region25: #{tpu_custom_call.1} parent=11 // pred_check
          %p232 = pneg %p130
        $region26: #{tpu_custom_call.1} parent=11 // pred_check_branch
          %234 = sbr.rel (%p232) target = $region28
        $region27: #{tpu_custom_call.1} parent=11 // pred_region
          _
        $region28: #{tpu_custom_call.1} parent=11 // pred_fallthru
          _
        // Predicated region
        $region29: #{tpu_custom_call.1} parent=11 // pred_check
          %p235 = pneg %p151
        $region30: #{tpu_custom_call.1} parent=11 // pred_check_branch
          %237 = sbr.rel (%p235) target = $region32
        $region31: #{tpu_custom_call.1} parent=11 // pred_region
          _
        $region32: #{tpu_custom_call.1} parent=11 // pred_fallthru
          _
        // Predicated region
        $region33: #{tpu_custom_call.1} parent=11 // pred_check
          %p238 = pneg %p172
        $region34: #{tpu_custom_call.1} parent=11 // pred_check_branch
          %240 = sbr.rel (%p238) target = $region36
        $region35: #{tpu_custom_call.1} parent=11 // pred_region
          _
        $region36: #{tpu_custom_call.1} parent=11 // pred_fallthru
          _
      $region12: #{tpu_custom_call.1} parent=5 // pred_fallthru
        _
      %p241 = scmp.lt.s32.totalorder %s20, 2
      // Predicated region
      $region37: #{tpu_custom_call.1} parent=5 // pred_check
        %p242 = pneg %p241
      $region38: #{tpu_custom_call.1} parent=5 // pred_check_branch
        %244 = sbr.rel (%p242) target = $region40
      $region39: #{tpu_custom_call.1} parent=5 // pred_region
        // Predicated region
        $region41: #{tpu_custom_call.1} parent=39 // pred_check
          %p245 = pneg %p40
        $region42: #{tpu_custom_call.1} parent=39 // pred_check_branch
          %247 = sbr.rel (%p245) target = $region44
        $region43: #{tpu_custom_call.1} parent=39 // pred_region
          %s248 = sand.u32 %s30, 1
          %s249 = scalar_lea.sflag [#allocation3], %s248
          %s250 = sand.u32 %s30, 1
          %s251 = smul.addr %s250, 16
          %s252 = scalar_lea.vmem [#allocation2], %s251
          %s253 = smul.u32 2, %s20
          %s255 = ssub.s32 256, 256
          %256 = vsyncadd %s249, %s255
          %s257 = smul.addr %s253, 128
          %s258 = scalar_lea.hbm %s0, %s257
          %s259 = sshll.u32 %s252, 4
          %s260 = int_to_ptr.vmem [resolvable:$true] %s259
          %265 = dma.hbm_to_vmem [thread:$0]  %s258, 256, %s260, %s249, 128, 128, 8
        $region44: #{tpu_custom_call.1} parent=39 // pred_fallthru
          _
      $region40: #{tpu_custom_call.1} parent=5 // pred_fallthru
        _
      %p266 = scmp.le.s32.totalorder 1, %s20
      %p267 = scmp.lt.s32.totalorder %s20, 3
      %p268 = pnand %p266, %p267
      %p269 = pneg %p268
      // Predicated region
      $region45: #{tpu_custom_call.1} parent=5 // pred_check
        _
      $region46: #{tpu_custom_call.1} parent=5 // pred_check_branch
        %271 = sbr.rel (%p268) target = $region48
      $region47: #{tpu_custom_call.1} parent=5 // pred_region
        %s272 = ssub.s32 %s20, 1
        %s273 = sand.u32 %s33, 1
        %s274 = scalar_lea.sflag [#allocation3], %s273
        %s275 = sand.u32 %s33, 1
        %s276 = smul.addr %s275, 16
        %s277 = scalar_lea.vmem [#allocation2], %s276
        // Predicated region
        $region49: #{tpu_custom_call.1} parent=47 // pred_check
          %p278 = pneg %p46
        $region50: #{tpu_custom_call.1} parent=47 // pred_check_branch
          %280 = sbr.rel (%p278) target = $region52
        $region51: #{tpu_custom_call.1} parent=47 // pred_region
          %281 = dma.done %s274, 256
        $region52: #{tpu_custom_call.1} parent=47 // pred_fallthru
          _
        // Predicated region
        $region53: #{tpu_custom_call.1} parent=47 // pred_check
          %p282 = pneg %p109
        $region54: #{tpu_custom_call.1} parent=47 // pred_check_branch
          %284 = sbr.rel (%p282) target = $region56
        $region55: #{tpu_custom_call.1} parent=47 // pred_region
          %285 = dma.done [#allocation6], 2048
        $region56: #{tpu_custom_call.1} parent=47 // pred_fallthru
          _
        %s286 = sand.u32 %s33, 1
        %s287 = scalar_lea.sflag [#allocation3], %s286
        %s288 = sand.u32 %s33, 1
        %s289 = smul.addr %s288, 16
        %s290 = scalar_lea.vmem [#allocation2], %s289
        %p291 = pneg %p46
        %p292 = pneg %p43
        %p293 = pneg %p67
        %p294 = pneg %p64
        %p295 = pneg %p88
        %p296 = pneg %p85
        %p297 = pneg %p109
        %p298 = pneg %p106
        %p299 = pneg %p130
        %p300 = pneg %p127
        %p301 = pneg %p151
        %p302 = pneg %p148
        %p303 = pneg %p172
        %p304 = pneg %p169
        %p305 = pneg %p198
        %p306 = pneg %p195
        %s307 = sand.u32 %s185, 1
        %s308 = scalar_lea.sflag [#allocation4], %s307
        %s309 = sand.u32 %s185, 1
        %s310 = smul.addr %s309, 16
        %s311 = scalar_lea.vmem [#allocation7], %s310
        %s312 = smul.u32 2, %s25
        %s313 = smul.u32 2, %s25
        %v314 = vld [vmem:[%s277] sm:$0xff]
        %v315 = vld [vmem:[%s277 + $0x8] sm:$0xff]
        %316 = vadd.xlane.f32.xlu0 %v314
        %v317 = vpop.xlane.xlu0 %316
        %318 = vadd.xlane.f32.xlu0 %v315
        %v319 = vpop.xlane.xlu0 %318
        %v320 = vmul.f32 %v317, 0.015625
        %v321 = vmul.f32 %v319, 0.015625
        %v322 = vsub.f32 %v314, %v320
        %v323 = vsub.f32 %v315, %v321
        %v324 = vmul.f32 %v322, %v322
        %v325 = vmul.f32 %v323, %v323
        %326 = vadd.xlane.f32.xlu0 %v324
        %v327 = vpop.xlane.xlu0 %326
        %328 = vadd.xlane.f32.xlu0 %v325
        %v329 = vpop.xlane.xlu0 %328
        %v330 = vmul.f32 %v320, %v320
        %v331 = vmul.f32 %v321, %v321
        %v332 = vmul.f32 %v330, 64.0
        %v333 = vmul.f32 %v331, 64.0
        %v334 = vsub.f32 %v327, %v332
        %v335 = vsub.f32 %v329, %v333
        %v336 = vmax.f32 %v334, 0.0
        %v337 = vmax.f32 %v335, 0.0
        %v338 = vmul.f32 %v336, 0.015625
        %v339 = vmul.f32 %v337, 0.015625
        %v340 = vadd.f32 %v338, 1e-05
        %v341 = vadd.f32 %v339, 1e-05
        %v342 = vrsqrt.pop %v340
        %v343 = vrsqrt.pop %v341
        %v344 = vmul.f32 %v322, %v342
        %v345 = vmul.f32 %v323, %v343
        %v346 = vld [vmem:[%s1] sm:$0x1]
        %v348 = vlaneseq
        %v349 = vshrl.u32 %v348, 7
        %v350 = vsub.s32 0, %v349
        %v351 = vrot.slane %v346, %v350
        %v353 = vmul.f32 %v344, %v351
        %v354 = vmul.f32 %v345, %v351
        %v355 = vld [vmem:[%s2] sm:$0x1]
        %v357 = vlaneseq
        %v358 = vshrl.u32 %v357, 7
        %v359 = vsub.s32 0, %v358
        %v360 = vrot.slane %v355, %v359
        %v362 = vadd.f32 %v353, %v360
        %v363 = vadd.f32 %v354, %v360
        %v364 = vld [vmem:[#allocation5] sm:$0xff]
        %v365 = vld [vmem:[#allocation5 + $0x8] sm:$0xff]
        %v366 = vld [vmem:[#allocation5 + $0x10] sm:$0xff]
        %v367 = vld [vmem:[#allocation5 + $0x18] sm:$0xff]
        %v368 = vld [vmem:[#allocation5 + $0x20] sm:$0xff]
        %v369 = vld [vmem:[#allocation5 + $0x28] sm:$0xff]
        %v370 = vld [vmem:[#allocation5 + $0x30] sm:$0xff]
        %v371 = vld [vmem:[#allocation5 + $0x38] sm:$0xff]
        %v372 = vld [vmem:[#allocation5 + $0x40] sm:$0xff]
        %v373 = vld [vmem:[#allocation5 + $0x48] sm:$0xff]
        %v374 = vld [vmem:[#allocation5 + $0x50] sm:$0xff]
        %v375 = vld [vmem:[#allocation5 + $0x58] sm:$0xff]
        %v376 = vld [vmem:[#allocation5 + $0x60] sm:$0xff]
        %v377 = vld [vmem:[#allocation5 + $0x68] sm:$0xff]
        %v378 = vld [vmem:[#allocation5 + $0x70] sm:$0xff]
        %v379 = vld [vmem:[#allocation5 + $0x78] sm:$0xff]
        %v380 = vld [vmem:[%s4] sm:$0x1]
        %v382 = vlaneseq
        %v383 = vshrl.u32 %v382, 7
        %v384 = vsub.s32 0, %v383
        %v385 = vrot.slane %v380, %v384
        %387 = vmatprep.subr.mxu0 0.0
        %388 = vmatpush1.msra.mxu0 %v379
        %389 = vmatprep.subr.mxu0 0.0
        %390 = vmatpush1.msra.mxu0 %v378
        %391 = vmatprep.subr.mxu0 0.0
        %392 = vmatpush1.msra.mxu0 %v377
        %393 = vmatprep.subr.mxu0 0.0
        %394 = vmatpush1.msra.mxu0 %v376
        %395 = vmatprep.subr.mxu0 0.0
        %396 = vmatpush1.msra.mxu0 %v375
        %397 = vmatprep.subr.mxu0 0.0
        %398 = vmatpush1.msra.mxu0 %v374
        %399 = vmatprep.subr.mxu0 0.0
        %400 = vmatpush1.msra.mxu0 %v373
        %401 = vmatprep.subr.mxu0 0.0
        %402 = vmatpush1.msra.mxu0 %v372
        %403 = vmatprep.subr.mxu0 0.0
        %404 = vmatpush1.msra.mxu0 %v371
        %405 = vmatprep.subr.mxu0 0.0
        %406 = vmatpush1.msra.mxu0 %v370
        %407 = vmatprep.subr.mxu0 0.0
        %408 = vmatpush1.msra.mxu0 %v369
        %409 = vmatprep.subr.mxu0 0.0
        %410 = vmatpush1.msra.mxu0 %v368
        %411 = vmatprep.subr.mxu0 0.0
        %412 = vmatpush1.msra.mxu0 %v367
        %413 = vmatprep.subr.mxu0 0.0
        %414 = vmatpush1.msra.mxu0 %v366
        %415 = vmatprep.subr.mxu0 0.0
        %416 = vmatpush1.msra.mxu0 %v365
        %417 = vmatprep.subr.mxu0 0.0
        %418 = vmatpush1.msra.mxu0 %v364
        %419 = vmatprep.subr.mxu0 0.0
        %420 = vmatpush2.msra.mxu0 0.0
        %421 = vmatprep.subr.mxu0 0.0
        %422 = vmatpush2.msra.mxu0 0.0
        %423 = vmatprep.subr.mxu0 0.0
        %424 = vmatpush2.msra.mxu0 0.0
        %425 = vmatprep.subr.mxu0 0.0
        %426 = vmatpush2.msra.mxu0 0.0
        %427 = vmatprep.subr.mxu0 0.0
        %428 = vmatpush2.msra.mxu0 0.0
        %429 = vmatprep.subr.mxu0 0.0
        %430 = vmatpush2.msra.mxu0 0.0
        %431 = vmatprep.subr.mxu0 0.0
        %432 = vmatpush2.msra.mxu0 0.0
        %433 = vmatprep.subr.mxu0 0.0
        %434 = vmatpush2.msra.mxu0 0.0
        %435 = vmatprep.subr.mxu0 0.0
        %436 = vmatpush2.msra.mxu0 0.0
        %437 = vmatprep.subr.mxu0 0.0
        %438 = vmatpush2.msra.mxu0 0.0
        %439 = vmatprep.subr.mxu0 0.0
        %440 = vmatpush2.msra.mxu0 0.0
        %441 = vmatprep.subr.mxu0 0.0
        %442 = vmatpush2.msra.mxu0 0.0
        %443 = vmatprep.subr.mxu0 0.0
        %444 = vmatpush2.msra.mxu0 0.0
        %445 = vmatprep.subr.mxu0 0.0
        %446 = vmatpush2.msra.mxu0 0.0
        %447 = vmatprep.subr.mxu0 0.0
        %448 = vmatpush2.msra.mxu0 0.0
        %449 = vmatprep.subr.mxu0 0.0
        %450 = vmatpush2.msra.mxu0 0.0
        %451 = vmatprep.mubr.f32.mxu0 0.0
        %452 = vmatmul.mubr.f32.gmra.mxu0 %v362
        %v453 = vpop.f32.mrf.mxu0
        %v454 = vadd.f32 %v385, %v453
        %v455 = vpop.f32.mrf.mxu0
        %456 = vmatprep.mubr.f32.mxu0 0.0
        %457 = vmatmul.mubr.f32.gmra.mxu0 %v363
        %v458 = vpop.f32.mrf.mxu0
        %v459 = vadd.f32 %v385, %v458
        %v460 = vpop.f32.mrf.mxu0
        %461 = vdwg.mxu0
        %462 = vadd.xlane.f32.xlu0 %v454
        %v463 = vpop.xlane.xlu0 %462
        %464 = vadd.xlane.f32.xlu0 %v459
        %v465 = vpop.xlane.xlu0 %464
        %v466 = vmul.f32 %v463, 0.03125
        %v467 = vmul.f32 %v465, 0.03125
        %v468 = vsub.f32 %v454, %v466
        %v469 = vsub.f32 %v459, %v467
        %v470 = vmul.f32 %v468, %v468
        %v471 = vmul.f32 %v469, %v469
        %472 = vadd.xlane.f32.xlu0 %v470
        %v473 = vpop.xlane.xlu0 %472
        %474 = vadd.xlane.f32.xlu0 %v471
        %v475 = vpop.xlane.xlu0 %474
        %v476 = vmul.f32 %v466, %v466
        %v477 = vmul.f32 %v467, %v467
        %v478 = vmul.f32 %v476, 96.0
        %v479 = vmul.f32 %v477, 96.0
        %v480 = vsub.f32 %v473, %v478
        %v481 = vsub.f32 %v475, %v479
        %v482 = vmax.f32 %v480, 0.0
        %v483 = vmax.f32 %v481, 0.0
        %v484 = vmul.f32 %v482, 0.03125
        %v485 = vmul.f32 %v483, 0.03125
        %v486 = vadd.f32 %v484, 1e-05
        %v487 = vadd.f32 %v485, 1e-05
        %v488 = vrsqrt.pop %v486
        %v489 = vrsqrt.pop %v487
        %v490 = vmul.f32 %v468, %v488
        %v491 = vmul.f32 %v469, %v489
        %v492 = vld [vmem:[%s5] sm:$0x1]
        %v494 = vlaneseq
        %v495 = vshrl.u32 %v494, 7
        %v496 = vsub.s32 0, %v495
        %v497 = vrot.slane %v492, %v496
        %v499 = vmul.f32 %v490, %v497
        %v500 = vmul.f32 %v491, %v497
        %v501 = vld [vmem:[%s6] sm:$0x1]
        %v503 = vlaneseq
        %v504 = vshrl.u32 %v503, 7
        %v505 = vsub.s32 0, %v504
        %v506 = vrot.slane %v501, %v505
        %v508 = vadd.f32 %v499, %v506
        %v509 = vadd.f32 %v500, %v506
        %510 = vst [vmem:[%s311] sm:$0xff] %v508
        %511 = vst [vmem:[%s311 + $0x8] sm:$0xff] %v509
        %s512 = sand.u32 %s185, 1
        %s513 = scalar_lea.sflag [#allocation4], %s512
        %s514 = sand.u32 %s185, 1
        %s515 = smul.addr %s514, 16
        %s516 = scalar_lea.vmem [#allocation7], %s515
        // Predicated region
        $region57: #{tpu_custom_call.1} parent=47 // pred_check
          %p517 = pneg %p195
        $region58: #{tpu_custom_call.1} parent=47 // pred_check_branch
          %519 = sbr.rel (%p517) target = $region60
        $region59: #{tpu_custom_call.1} parent=47 // pred_region
          %s520 = smul.u32 2, %s25
          %s522 = ssub.s32 256, 256
          %523 = vsyncadd %s513, %s522
          %s524 = smul.addr %s520, 128
          %s525 = scalar_lea.hbm %s7, %s524
          %s526 = sshll.u32 %s516, 4
          %s527 = int_to_ptr.vmem [resolvable:$true] %s526
          %532 = dma.vmem_to_hbm [thread:$0]  %s527, 256, %s525, %s513, 128, 128, 8
        $region60: #{tpu_custom_call.1} parent=47 // pred_fallthru
          _
      $region48: #{tpu_custom_call.1} parent=5 // pred_fallthru
        _
      %p533 = scmp.le.s32.totalorder 2, %s20
      // Predicated region
      $region61: #{tpu_custom_call.1} parent=5 // pred_check
        %p534 = pneg %p533
      $region62: #{tpu_custom_call.1} parent=5 // pred_check_branch
        %536 = sbr.rel (%p534) target = $region64
      $region63: #{tpu_custom_call.1} parent=5 // pred_region
        %s537 = ssub.s32 %s20, 2
        // Predicated region
        $region65: #{tpu_custom_call.1} parent=63 // pred_check
          %p538 = pneg %p201
        $region66: #{tpu_custom_call.1} parent=63 // pred_check_branch
          %540 = sbr.rel (%p538) target = $region68
        $region67: #{tpu_custom_call.1} parent=63 // pred_region
          %s541 = sand.u32 %s186, 1
          %s542 = scalar_lea.sflag [#allocation4], %s541
          %s543 = sand.u32 %s186, 1
          %s544 = smul.addr %s543, 16
          %s545 = scalar_lea.vmem [#allocation7], %s544
          %546 = dma.done %s542, 256
        $region68: #{tpu_custom_call.1} parent=63 // pred_fallthru
          _
      $region64: #{tpu_custom_call.1} parent=5 // pred_fallthru
        _
    $region6: #{tpu_custom_call.1} parent=1 // loop_footer
      %s24 = sadd.s32 1, %s20
    $region7: #{tpu_custom_call.1} parent=1 // loop_footer_branch
      %19 = sbr.rel target = $region3
    $region8: #{tpu_custom_call.1} parent=1 // loop_exit
      _
    %547 = vsyncpa [#allocation3], 1
    %s548 = scalar_lea.sflag [#allocation3], 1
    %549 = vsyncpa %s548, 1
    %550 = vsyncpa [#allocation6], 1
    %551 = vsyncpa [#allocation4], 1
    %s552 = scalar_lea.sflag [#allocation4], 1
    %553 = vsyncpa %s552, 1

</llo_original>
